<compile_context>
chip_gen: v5e
topology: v5e:2x2
jax: 0.10.0
libtpu: 0.0.40
codegen_flags: <defaults>
</compile_context>

<pallas_src>
import functools
import math

import jax
import jax.numpy as jnp
from jax.experimental import pallas as pl
from jax.experimental.pallas import tpu as pltpu

_LOG2E = math.log2(math.e)


def _flash_sdpa_kernel(q_ref, k_ref, v_ref, o_ref, m_ref, l_ref, acc_ref,
                       *, scale_log2e, compute_dtype):
    """One grid step: (G, tq, D) queries vs one (G, tkv, D) KV tile, online softmax.

    Softmax is computed in the log2 domain: s2 = (Q @ K^T) * (scale * log2(e)), probabilities
    p = exp2(s2 - m2). This is mathematically identical to exp((Q@K^T)*scale - m) softmax and
    avoids both a per-step Q rescale and the hidden *log2(e) multiply inside jnp.exp.
    """
    kv = pl.program_id(2)

    @pl.when(kv == 0)
    def _():
        m_ref[...] = jnp.full_like(m_ref, -jnp.inf)
        l_ref[...] = jnp.zeros_like(l_ref)
        acc_ref[...] = jnp.zeros_like(acc_ref)

    # Q @ K^T without an explicit transpose: contract the last dim of both operands.
    # Operands stay in their (bf16) compute dtype for the MXU; accumulate in f32.
    s = jnp.einsum("gqd,gkd->gqk", q_ref[...], k_ref[...],
                   preferred_element_type=jnp.float32)            # (G, tq, tkv) f32
    s = s * scale_log2e                                           # log2-domain scores

    m_prev = m_ref[...]
    m_new = jnp.maximum(m_prev, s.max(axis=-1, keepdims=True))    # (G, tq, 1)
    alpha = jnp.exp2(m_prev - m_new)                              # (G, tq, 1)
    p = jnp.exp2(s - m_new)                                       # (G, tq, tkv) f32

    l_ref[...] = alpha * l_ref[...] + p.sum(axis=-1, keepdims=True)
    acc_ref[...] = alpha * acc_ref[...] + jnp.einsum(
        "gqk,gkd->gqd", p.astype(compute_dtype), v_ref[...],
        preferred_element_type=jnp.float32)
    m_ref[...] = m_new

    @pl.when(kv == pl.num_programs(2) - 1)
    def _():
        # Runs once per q-tile -> exact normalization costs essentially nothing.
        o_ref[...] = (acc_ref[...] / l_ref[...]).astype(o_ref.dtype)


def _largest_tile(dim, target, granule):
    """Largest divisor of `dim` that is <= target, preferring multiples of `granule`
    (16 for packed bf16 sublanes), then multiples of 8, then any divisor; if `dim` itself
    is <= target, use it whole."""
    if dim <= target:
        return dim
    best_8 = None
    best_any = None
    for t in range(min(dim, target), 0, -1):
        if dim % t == 0:
            if t % granule == 0:
                return t
            if best_8 is None and t % 8 == 0:
                best_8 = t
            if best_any is None:
                best_any = t
    if best_8 is not None:
        return best_8
    # TODO(synk): odd dims with no aligned divisor fall back to a single full-length tile.
    return dim if best_any is None or best_any < 8 else best_any


def _largest_divisor(n, target):
    for g in range(min(n, target), 0, -1):
        if n % g == 0:
            return g
    return 1


def _pick_group(bh, target=4):
    """Largest divisor of bh <= target that keeps the leading parallel grid axis (bh//G) >= 2
    when possible (helps 2-TensorCore sharding on v7x)."""
    best = 1
    for g in range(1, min(bh, target) + 1):
        if bh % g == 0 and bh // g >= 2:
            best = g
    return best


def _vmem_limit_bytes():
    """Scoped-VMEM cap: generous on 128 MiB parts (v5e/v6e), conservative on 64 MiB (v7x)."""
    cap = 64 * 1024 * 1024
    try:
        cap = int(pltpu.get_tpu_info().vmem_capacity_bytes)
    except Exception:  # off-device tracing / API drift: assume the smallest part
        pass
    if cap >= 128 * 1024 * 1024:
        return 96 * 1024 * 1024
    return 40 * 1024 * 1024


def scaled_dot_product_attention(Q, K, V, mask=None, *,
                                 block_q=256, block_kv=512, head_batch=None):
    """Pallas flash-attention implementation of ScaledDotProductAttention.forward.

    Q, K, V: [B, H, S, D] arrays of the same dtype.

    WARNING: `mask` is accepted only for API parity and has NO effect — the reference
    PyTorch module's masking branch writes to a dead variable, and that behavior is
    reproduced faithfully here. Dropout is identity (eval mode).
    """
    del mask  # reproduces the reference module's dead masking branch (see docstring)
    B, H, S, D = Q.shape
    BH = B * H

    out_dtype = Q.dtype
    # bf16 operands for the MXU (f32 matmul is emulated at a fraction of peak on TPU).
    compute_dtype = jnp.bfloat16 if Q.dtype == jnp.float32 else Q.dtype
    itemsize = jnp.dtype(compute_dtype).itemsize

    # scale * log2(e), folded into the single per-element multiply on the score tile.
    scale_log2e = _LOG2E / math.sqrt(D)

    granule = 16 if itemsize < 4 else 8
    tq = _largest_tile(S, block_q, granule)
    tkv = _largest_tile(S, block_kv, granule)
    G = head_batch if head_batch is not None else _pick_group(BH)
    G = _largest_divisor(BH, G)

    q = Q.reshape(BH, S, D).astype(compute_dtype)
    k = K.reshape(BH, S, D).astype(compute_dtype)
    v = V.reshape(BH, S, D).astype(compute_dtype)

    grid = (BH // G, S // tq, S // tkv)

    q_spec = pl.BlockSpec((G, tq, D), lambda g, qi, ki: (g, qi, 0))
    k_spec = pl.BlockSpec((G, tkv, D), lambda g, qi, ki: (g, ki, 0))
    v_spec = pl.BlockSpec((G, tkv, D), lambda g, qi, ki: (g, ki, 0))
    o_spec = pl.BlockSpec((G, tq, D), lambda g, qi, ki: (g, qi, 0))  # resident over kv

    cost = pl.CostEstimate(
        flops=4 * BH * S * S * D,                 # QK^T + PV
        transcendentals=BH * S * S,               # exp2 over the score tiles
        bytes_accessed=3 * BH * S * D * itemsize
        + BH * S * D * jnp.dtype(out_dtype).itemsize,
    )

    out = pl.pallas_call(
        functools.partial(_flash_sdpa_kernel,
                          scale_log2e=scale_log2e, compute_dtype=compute_dtype),
        out_shape=jax.ShapeDtypeStruct((BH, S, D), out_dtype),
        grid_spec=pltpu.PrefetchScalarGridSpec(
            num_scalar_prefetch=0,
            grid=grid,
            in_specs=[q_spec, k_spec, v_spec],
            out_specs=o_spec,
            scratch_shapes=[
                pltpu.VMEM((G, tq, 1), jnp.float32),   # running max (log2 domain)
                pltpu.VMEM((G, tq, 1), jnp.float32),   # running sum
                pltpu.VMEM((G, tq, D), jnp.float32),   # output accumulator
            ],
        ),
        compiler_params=pltpu.CompilerParams(
            dimension_semantics=("parallel", "parallel", "arbitrary"),
            vmem_limit_bytes=_vmem_limit_bytes(),
        ),
        cost_estimate=cost,
    )(q, k, v)

    return out.reshape(B, H, S, D)


def _reference(Q, K, V):
    d = Q.shape[-1]
    scores = jnp.einsum("bhqd,bhkd->bhqk", Q, K) / math.sqrt(d)
    attn = jax.nn.softmax(scores, axis=-1)
    return jnp.einsum("bhqk,bhkd->bhqd", attn, V)


if __name__ == "__main__":
    key = jax.random.PRNGKey(0)
    kq, kk, kv = jax.random.split(key, 3)

    # Small but tiling-exercising shapes: lane-dense head dim (D=128), two q-tiles and two
    # kv-tiles per (batch, head) group, and two groups on the leading parallel axis.
    B, H, S, D = 2, 2, 256, 128
    Q = jax.random.normal(kq, (B, H, S, D), dtype=jnp.float32)
    K = jax.random.normal(kk, (B, H, S, D), dtype=jnp.float32)
    V = jax.random.normal(kv, (B, H, S, D), dtype=jnp.float32)

    out = scaled_dot_product_attention(Q, K, V, block_q=128, block_kv=128, head_batch=2)
    out = jax.block_until_ready(out)

    ref = _reference(Q, K, V)
    assert out.shape == (B, H, S, D)
    # Tolerance accounts for bf16 matmul operands (MXU compute dtype); stats/acc are f32.
    assert jnp.allclose(out, ref, atol=2e-2, rtol=2e-2), "mismatch vs reference"

    print("KERNEL_OK")
</pallas_src>

<mosaic_0001>
module attributes {stable_mosaic.version = 11 : i64} {
  func.func @_flash_sdpa_kernel(%arg0: i32, %arg1: i32, %arg2: i32, %arg3: memref<2x128x128xbf16, #tpu.memory_space<vmem>>, %arg4: memref<2x128x128xbf16, #tpu.memory_space<vmem>>, %arg5: memref<2x128x128xbf16, #tpu.memory_space<vmem>>, %arg6: memref<2x128x128xf32, #tpu.memory_space<vmem>>, %arg7: memref<2x128x1xf32, #tpu.memory_space<vmem>>, %arg8: memref<2x128x1xf32, #tpu.memory_space<vmem>>, %arg9: memref<2x128x128xf32, #tpu.memory_space<vmem>>) attributes {dimension_semantics = [#tpu.dimension_semantics<parallel>, #tpu.dimension_semantics<parallel>, #tpu.dimension_semantics<arbitrary>], iteration_bounds = array<i64: 2, 2, 2>, scalar_prefetch = 0 : i64, scratch_operands = 3 : i64, tpu.core_type = #tpu.core_type<tc>, window_params = [{transform_indices = @transform_0, window_bounds = array<i64: 2, 128, 128>}, {transform_indices = @transform_1, window_bounds = array<i64: 2, 128, 128>}, {transform_indices = @transform_2, window_bounds = array<i64: 2, 128, 128>}, {transform_indices = @transform_3, window_bounds = array<i64: 2, 128, 128>}]} {
    %c0_i32 = arith.constant 0 : i32
    %0 = arith.cmpi eq, %arg2, %c0_i32 : i32
    %1 = arith.extui %0 : i1 to i32
    %c0_i32_0 = arith.constant 0 : i32
    %2 = arith.cmpi ne, %1, %c0_i32_0 : i32
    scf.if %2 {
      %cst_32 = arith.constant 0xFF800000 : f32
      %35 = vector.broadcast %cst_32 : f32 to vector<2x128x1xf32>
      %c0_33 = arith.constant 0 : index
      %c0_34 = arith.constant 0 : index
      %c0_35 = arith.constant 0 : index
      %36 = vector.load %arg7[%c0_33, %c0_34, %c0_35] : memref<2x128x1xf32, #tpu.memory_space<vmem>>, vector<2x128x1xf32>
      tpu.vector_store %arg7[%c0_33, %c0_34, %c0_35], %35 {strides = array<i32>} : memref<2x128x1xf32, #tpu.memory_space<vmem>>, vector<2x128x1xf32>,
      %cst_36 = arith.constant 0.000000e+00 : f32
      %37 = vector.broadcast %cst_36 : f32 to vector<2x128x1xf32>
      %c0_37 = arith.constant 0 : index
      %c0_38 = arith.constant 0 : index
      %c0_39 = arith.constant 0 : index
      %38 = vector.load %arg8[%c0_37, %c0_38, %c0_39] : memref<2x128x1xf32, #tpu.memory_space<vmem>>, vector<2x128x1xf32>
      tpu.vector_store %arg8[%c0_37, %c0_38, %c0_39], %37 {strides = array<i32>} : memref<2x128x1xf32, #tpu.memory_space<vmem>>, vector<2x128x1xf32>,
      %cst_40 = arith.constant 0.000000e+00 : f32
      %39 = vector.broadcast %cst_40 : f32 to vector<2x128x128xf32>
      %c0_41 = arith.constant 0 : index
      %c0_42 = arith.constant 0 : index
      %c0_43 = arith.constant 0 : index
      %40 = vector.load %arg9[%c0_41, %c0_42, %c0_43] : memref<2x128x128xf32, #tpu.memory_space<vmem>>, vector<2x128x128xf32>
      tpu.vector_store %arg9[%c0_41, %c0_42, %c0_43], %39 {strides = array<i32>} : memref<2x128x128xf32, #tpu.memory_space<vmem>>, vector<2x128x128xf32>,
    } else {
    }
    %c0 = arith.constant 0 : index
    %c0_1 = arith.constant 0 : index
    %c0_2 = arith.constant 0 : index
    %3 = vector.load %arg3[%c0, %c0_1, %c0_2] : memref<2x128x128xbf16, #tpu.memory_space<vmem>>, vector<2x128x128xbf16>
    %c0_3 = arith.constant 0 : index
    %c0_4 = arith.constant 0 : index
    %c0_5 = arith.constant 0 : index
    %4 = vector.load %arg4[%c0_3, %c0_4, %c0_5] : memref<2x128x128xbf16, #tpu.memory_space<vmem>>, vector<2x128x128xbf16>
    "tpu.trace_start"() <{level = 10 : i32, message = "gqd,gkd->gqk"}> : () -> ()
    %cst = arith.constant dense<0.000000e+00> : vector<2x128x128xf32>
    %5 = tpu.matmul %3, %4, %cst {dimension_numbers = #tpu.dot_dimension_numbers<[2], [2], [1], [1], [0, 0, 0, 1, 1, 1], [0], [0]>} : vector<2x128x128xbf16>, vector<2x128x128xbf16>, vector<2x128x128xf32> -> vector<2x128x128xf32>
    "tpu.trace_stop"() : () -> ()
    %cst_6 = arith.constant 0.127517432 : f32
    %6 = vector.broadcast %cst_6 : f32 to vector<2x128x128xf32>
    %7 = arith.mulf %5, %6 : vector<2x128x128xf32>
    %c0_7 = arith.constant 0 : index
    %c0_8 = arith.constant 0 : index
    %c0_9 = arith.constant 0 : index
    %8 = vector.load %arg7[%c0_7, %c0_8, %c0_9] : memref<2x128x1xf32, #tpu.memory_space<vmem>>, vector<2x128x1xf32>
    %cst_10 = arith.constant dense<0xFF800000> : vector<2x128xf32>
    %9 = vector.multi_reduction <maximumf>, %7, %cst_10 [2] : vector<2x128x128xf32> to vector<2x128xf32>
    %10 = vector.shape_cast %9 : vector<2x128xf32> to vector<2x128x1xf32>
    %11 = arith.maximumf %8, %10 : vector<2x128x1xf32>
    %12 = arith.subf %8, %11 : vector<2x128x1xf32>
    %13 = math.exp2 %12 : vector<2x128x1xf32>
    %14 = vector.broadcast %11 : vector<2x128x1xf32> to vector<2x128x128xf32>
    %15 = arith.subf %7, %14 : vector<2x128x128xf32>
    %16 = math.exp2 %15 : vector<2x128x128xf32>
    %c0_11 = arith.constant 0 : index
    %c0_12 = arith.constant 0 : index
    %c0_13 = arith.constant 0 : index
    %17 = vector.load %arg8[%c0_11, %c0_12, %c0_13] : memref<2x128x1xf32, #tpu.memory_space<vmem>>, vector<2x128x1xf32>
    %18 = arith.mulf %13, %17 : vector<2x128x1xf32>
    %cst_14 = arith.constant dense<0.000000e+00> : vector<2x128xf32>
    %19 = vector.multi_reduction <add>, %16, %cst_14 [2] : vector<2x128x128xf32> to vector<2x128xf32>
    %20 = vector.shape_cast %19 : vector<2x128xf32> to vector<2x128x1xf32>
    %21 = arith.addf %18, %20 : vector<2x128x1xf32>
    %c0_15 = arith.constant 0 : index
    %c0_16 = arith.constant 0 : index
    %c0_17 = arith.constant 0 : index
    %22 = vector.load %arg8[%c0_15, %c0_16, %c0_17] : memref<2x128x1xf32, #tpu.memory_space<vmem>>, vector<2x128x1xf32>
    tpu.vector_store %arg8[%c0_15, %c0_16, %c0_17], %21 {strides = array<i32>} : memref<2x128x1xf32, #tpu.memory_space<vmem>>, vector<2x128x1xf32>,
    %c0_18 = arith.constant 0 : index
    %c0_19 = arith.constant 0 : index
    %c0_20 = arith.constant 0 : index
    %23 = vector.load %arg9[%c0_18, %c0_19, %c0_20] : memref<2x128x128xf32, #tpu.memory_space<vmem>>, vector<2x128x128xf32>
    %24 = vector.broadcast %13 : vector<2x128x1xf32> to vector<2x128x128xf32>
    %25 = arith.mulf %24, %23 : vector<2x128x128xf32>
    %26 = arith.truncf %16 : vector<2x128x128xf32> to vector<2x128x128xbf16>
    %c0_21 = arith.constant 0 : index
    %c0_22 = arith.constant 0 : index
    %c0_23 = arith.constant 0 : index
    %27 = vector.load %arg5[%c0_21, %c0_22, %c0_23] : memref<2x128x128xbf16, #tpu.memory_space<vmem>>, vector<2x128x128xbf16>
    "tpu.trace_start"() <{level = 10 : i32, message = "gqk,gkd->gqd"}> : () -> ()
    %cst_24 = arith.constant dense<0.000000e+00> : vector<2x128x128xf32>
    %28 = tpu.matmul %26, %27, %cst_24 {dimension_numbers = #tpu.dot_dimension_numbers<[2], [1], [1], [2], [0, 0, 0, 1, 1, 2], [0], [0]>} : vector<2x128x128xbf16>, vector<2x128x128xbf16>, vector<2x128x128xf32> -> vector<2x128x128xf32>
    "tpu.trace_stop"() : () -> ()
    %29 = arith.addf %25, %28 : vector<2x128x128xf32>
    %c0_25 = arith.constant 0 : index
    %c0_26 = arith.constant 0 : index
    %c0_27 = arith.constant 0 : index
    %30 = vector.load %arg9[%c0_25, %c0_26, %c0_27] : memref<2x128x128xf32, #tpu.memory_space<vmem>>, vector<2x128x128xf32>
    tpu.vector_store %arg9[%c0_25, %c0_26, %c0_27], %29 {strides = array<i32>} : memref<2x128x128xf32, #tpu.memory_space<vmem>>, vector<2x128x128xf32>,
    %c0_28 = arith.constant 0 : index
    %c0_29 = arith.constant 0 : index
    %c0_30 = arith.constant 0 : index
    %31 = vector.load %arg7[%c0_28, %c0_29, %c0_30] : memref<2x128x1xf32, #tpu.memory_space<vmem>>, vector<2x128x1xf32>
    tpu.vector_store %arg7[%c0_28, %c0_29, %c0_30], %11 {strides = array<i32>} : memref<2x128x1xf32, #tpu.memory_space<vmem>>, vector<2x128x1xf32>,
    %c1_i32 = arith.constant 1 : i32
    %32 = arith.cmpi eq, %arg2, %c1_i32 : i32
    %33 = arith.extui %32 : i1 to i32
    %c0_i32_31 = arith.constant 0 : i32
    %34 = arith.cmpi ne, %33, %c0_i32_31 : i32
    scf.if %34 {
      %c0_32 = arith.constant 0 : index
      %c0_33 = arith.constant 0 : index
      %c0_34 = arith.constant 0 : index
      %35 = vector.load %arg9[%c0_32, %c0_33, %c0_34] : memref<2x128x128xf32, #tpu.memory_space<vmem>>, vector<2x128x128xf32>
      %c0_35 = arith.constant 0 : index
      %c0_36 = arith.constant 0 : index
      %c0_37 = arith.constant 0 : index
      %36 = vector.load %arg8[%c0_35, %c0_36, %c0_37] : memref<2x128x1xf32, #tpu.memory_space<vmem>>, vector<2x128x1xf32>
      %37 = vector.broadcast %36 : vector<2x128x1xf32> to vector<2x128x128xf32>
      %38 = arith.divf %35, %37 : vector<2x128x128xf32>
      %c0_38 = arith.constant 0 : index
      %c0_39 = arith.constant 0 : index
      %c0_40 = arith.constant 0 : index
      %39 = vector.load %arg6[%c0_38, %c0_39, %c0_40] : memref<2x128x128xf32, #tpu.memory_space<vmem>>, vector<2x128x128xf32>
      tpu.vector_store %arg6[%c0_38, %c0_39, %c0_40], %38 {strides = array<i32>} : memref<2x128x128xf32, #tpu.memory_space<vmem>>, vector<2x128x128xf32>,
    } else {
    }
    return
  }
  func.func @transform_0(%arg0: i32, %arg1: i32, %arg2: i32) -> (i32, i32, i32) {
    %c0_i32 = arith.constant 0 : i32
    %c0_i32_0 = arith.constant 0 : i32
    return %arg0, %arg1, %c0_i32 : i32, i32, i32
  }
  func.func @transform_1(%arg0: i32, %arg1: i32, %arg2: i32) -> (i32, i32, i32) {
    %c0_i32 = arith.constant 0 : i32
    %c0_i32_0 = arith.constant 0 : i32
    return %arg0, %arg2, %c0_i32 : i32, i32, i32
  }
  func.func @transform_2(%arg0: i32, %arg1: i32, %arg2: i32) -> (i32, i32, i32) {
    %c0_i32 = arith.constant 0 : i32
    %c0_i32_0 = arith.constant 0 : i32
    return %arg0, %arg2, %c0_i32 : i32, i32, i32
  }
  func.func @transform_3(%arg0: i32, %arg1: i32, %arg2: i32) -> (i32, i32, i32) {
    %c0_i32 = arith.constant 0 : i32
    %c0_i32_0 = arith.constant 0 : i32
    return %arg0, %arg1, %c0_i32 : i32, i32, i32
  }
}

</mosaic_0001>

<llo_original>
// kernel: tpu_custom_call.1
$region0: #{tpu_custom_call.1}
  #allocation0 [shape = 'u32[]', space=smem, size = 0x4, offset = 0x4, fixed_abs, tag = 'smem constant byte address 0x4 - core index']
  #allocation1 [shape = 'u32[72,128]{1,0:T(1,128)}', space=vmem, size = 0x9000, scoped, tag = 'internal scratch']
  #allocation2 [shape = 'f32[2,128,1]{2,1,0:T(8,128)}', space=vmem, size = 0x20000, scoped, tag = 'scratch operand']
  #allocation3 [shape = 'f32[2,128,1]{2,1,0:T(8,128)}', space=vmem, size = 0x20000, scoped, tag = 'scratch operand']
  #allocation4 [shape = 'f32[2,128,128]{2,1,0:T(8,128)}', space=vmem, size = 0x20000, scoped, tag = 'scratch operand']
  #allocation12 [shape = 's32[]', space=sflag, size = 0x4, offset = 0, fixed_abs, tag = 'sflag constant byte address 0x0 - dummy sync flag']
  #allocation14 [shape = 's32[]', space=sflag, size = 0x4, offset = 0, fixed_abs, tag = 'sflag constant byte address 0x0 - dummy sync flag']
  #allocation16 [shape = 's32[]', space=sflag, size = 0x4, offset = 0, fixed_abs, tag = 'sflag constant byte address 0x0 - dummy sync flag']
  #allocation18 [shape = 's32[]', space=sflag, size = 0x4, offset = 0, fixed_abs, tag = 'sflag constant byte address 0x0 - dummy sync flag']
  %s0 = inlined_call_operand.hbm [shape: bf16[4,256,128], index: 0, kind: input, shape index: {}]
  %s1 = inlined_call_operand.hbm [shape: bf16[4,256,128], index: 1, kind: input, shape index: {}]
  %s2 = inlined_call_operand.hbm [shape: bf16[4,256,128], index: 2, kind: input, shape index: {}]
  %s3 = inlined_call_operand.hbm [shape: f32[4,256,128], index: 3, kind: output, shape index: {}]
  %s4 = sld [smem:[#allocation0]]
  $region65: #{tpu_custom_call.1} parent=0
    _
  %s6 = ssub.s32 1, %s4
  %s7 = scalar_select 0, %s6, %s4
  $region1: #{tpu_custom_call.1} parent=0
    #allocation5 [shape = 'u8[131072]{0}', space=vmem, size = 0x20000, scoped, tag = 'input window, operand 0']
    #allocation6 [shape = 's32[2]{0}', space=sflag, size = 0x8, scoped, tag = 'scoped memory for tpu_custom_call.1']
    #allocation7 [shape = 's32[2]{0}', space=sflag, size = 0x8, scoped, tag = 'scoped memory for tpu_custom_call.1']
    #allocation8 [shape = 'u8[131072]{0}', space=vmem, size = 0x20000, scoped, tag = 'input window, operand 1']
    #allocation9 [shape = 's32[2]{0}', space=sflag, size = 0x8, scoped, tag = 'scoped memory for tpu_custom_call.1']
    #allocation10 [shape = 'u8[131072]{0}', space=vmem, size = 0x20000, scoped, tag = 'input window, operand 2']
    #allocation11 [shape = 'u8[262144]{0}', space=vmem, size = 0x40000, scoped, tag = 'output window, operand 0']
    %8 = vsyncpa [#allocation6], 0
    %s9 = scalar_lea.sflag [#allocation6], 1
    %10 = vsyncpa %s9, 0
    %11 = vsyncpa [#allocation9], 0
    %s12 = scalar_lea.sflag [#allocation9], 1
    %13 = vsyncpa %s12, 0
    %14 = vsyncpa [#allocation7], 0
    %s15 = scalar_lea.sflag [#allocation7], 1
    %16 = vsyncpa %s15, 0
    loop: start=0, step=1, limit=10
    $region2: #{tpu_custom_call.1} parent=1 // loop_pre_header
      _
    $region3: #{tpu_custom_call.1} parent=1 // loop_header
      %s18 = sphi 0, %s22
      %p19 = scmp.ge.s32.totalorder %s18, 10
      %s25 = sphi 0, %s44
      %s26 = sphi 0, %s40
      %s27 = sphi 0, %s36
      %s28 = sphi 0, %s25
      %s29 = sphi 0, %s26
      %s30 = sphi 0, %s27
      %s31 = sphi 0, %s28
      %s32 = sphi 0, %s29
      %s33 = sphi 0, %s30
      %s49 = sphi 0, %s51
      %s52 = sphi 0, %s49
      %s53 = sphi 0, %s52
      %s69 = sphi 0, %s53
      %s77 = sphi 0, %s79
      %s80 = sphi 0, %s77
      %s81 = sphi 0, %s80
      %s97 = sphi 0, %s81
      %s105 = sphi 0, %s107
      %s108 = sphi 0, %s105
      %s109 = sphi 0, %s108
      %s125 = sphi 0, %s109
      %s133 = sphi 0, %s135
      %s136 = sphi 0, %s133
      %s137 = sphi 0, %s136
      %s153 = sphi 0, %s137
    $region4: #{tpu_custom_call.1} parent=1 // loop_header_branch
      %21 = sbr.rel (%p19) target = $region8
    $region5: #{tpu_custom_call.1} parent=1 // loop_body
      %s23 = ssub.s32 %s18, 1
      %s24 = ssub.s32 %s18, 2
      %s34 = sadd.s32 1, %s27
      %p35 = scmp.ge.s32.totalorder %s34, 2
      %s36 = scalar_select %p35, 0, %s34
      %s37 = sadd.s32 1, %s26
      %s38 = scalar_select %p35, %s37, %s26
      %p39 = scmp.ge.s32.totalorder %s38, 2
      %s40 = scalar_select %p39, 0, %s38
      %s41 = sadd.s32 1, %s25
      %s42 = scalar_select %p39, %s41, %s25
      %p43 = scmp.ge.s32.totalorder %s42, 2
      %s44 = scalar_select %p43, 0, %s42
      %s45 = ssub.s32 %s25, %s44
      %s46 = ssub.s32 %s26, %s40
      %s47 = sor.u32 %s45, %s46
      %p48 = scmp.eq.s32.totalorder %s47, 0
      %s50 = sadd.s32 %s49, 1
      %s51 = scalar_select %p48, %s49, %s50
      %p54 = pneg %p48
      %p55 = scmp.eq.s32.totalorder %s18, 7
      %p56 = por %p54, %p55
      %p57 = scmp.ne.s32.totalorder %s49, %s52
      %p58 = scmp.eq.s32.totalorder %s18, 0
      %p59 = por %p57, %p58
      %p60 = scmp.ne.s32.totalorder %s49, %s52
      %p61 = scmp.eq.s32.totalorder %s23, 7
      %p62 = por %p60, %p61
      %p63 = scmp.ne.s32.totalorder %s52, %s53
      %p64 = scmp.eq.s32.totalorder %s23, 0
      %p65 = por %p63, %p64
      %p66 = scmp.ne.s32.totalorder %s52, %s53
      %p67 = scmp.eq.s32.totalorder %s24, 7
      %p68 = por %p66, %p67
      %p70 = scmp.ne.s32.totalorder %s53, %s69
      %p71 = scmp.eq.s32.totalorder %s24, 0
      %p72 = por %p70, %p71
      %s73 = ssub.s32 %s25, %s44
      %s74 = ssub.s32 %s27, %s36
      %s75 = sor.u32 %s73, %s74
      %p76 = scmp.eq.s32.totalorder %s75, 0
      %s78 = sadd.s32 %s77, 1
      %s79 = scalar_select %p76, %s77, %s78
      %p82 = pneg %p76
      %p83 = scmp.eq.s32.totalorder %s18, 7
      %p84 = por %p82, %p83
      %p85 = scmp.ne.s32.totalorder %s77, %s80
      %p86 = scmp.eq.s32.totalorder %s18, 0
      %p87 = por %p85, %p86
      %p88 = scmp.ne.s32.totalorder %s77, %s80
      %p89 = scmp.eq.s32.totalorder %s23, 7
      %p90 = por %p88, %p89
      %p91 = scmp.ne.s32.totalorder %s80, %s81
      %p92 = scmp.eq.s32.totalorder %s23, 0
      %p93 = por %p91, %p92
      %p94 = scmp.ne.s32.totalorder %s80, %s81
      %p95 = scmp.eq.s32.totalorder %s24, 7
      %p96 = por %p94, %p95
      %p98 = scmp.ne.s32.totalorder %s81, %s97
      %p99 = scmp.eq.s32.totalorder %s24, 0
      %p100 = por %p98, %p99
      %s101 = ssub.s32 %s25, %s44
      %s102 = ssub.s32 %s27, %s36
      %s103 = sor.u32 %s101, %s102
      %p104 = scmp.eq.s32.totalorder %s103, 0
      %s106 = sadd.s32 %s105, 1
      %s107 = scalar_select %p104, %s105, %s106
      %p110 = pneg %p104
      %p111 = scmp.eq.s32.totalorder %s18, 7
      %p112 = por %p110, %p111
      %p113 = scmp.ne.s32.totalorder %s105, %s108
      %p114 = scmp.eq.s32.totalorder %s18, 0
      %p115 = por %p113, %p114
      %p116 = scmp.ne.s32.totalorder %s105, %s108
      %p117 = scmp.eq.s32.totalorder %s23, 7
      %p118 = por %p116, %p117
      %p119 = scmp.ne.s32.totalorder %s108, %s109
      %p120 = scmp.eq.s32.totalorder %s23, 0
      %p121 = por %p119, %p120
      %p122 = scmp.ne.s32.totalorder %s108, %s109
      %p123 = scmp.eq.s32.totalorder %s24, 7
      %p124 = por %p122, %p123
      %p126 = scmp.ne.s32.totalorder %s109, %s125
      %p127 = scmp.eq.s32.totalorder %s24, 0
      %p128 = por %p126, %p127
      %s129 = ssub.s32 %s25, %s44
      %s130 = ssub.s32 %s26, %s40
      %s131 = sor.u32 %s129, %s130
      %p132 = scmp.eq.s32.totalorder %s131, 0
      %s134 = sadd.s32 %s133, 1
      %s135 = scalar_select %p132, %s133, %s134
      %p138 = pneg %p132
      %p139 = scmp.eq.s32.totalorder %s18, 7
      %p140 = por %p138, %p139
      %p141 = scmp.ne.s32.totalorder %s133, %s136
      %p142 = scmp.eq.s32.totalorder %s18, 0
      %p143 = por %p141, %p142
      %p144 = scmp.ne.s32.totalorder %s133, %s136
      %p145 = scmp.eq.s32.totalorder %s23, 7
      %p146 = por %p144, %p145
      %p147 = scmp.ne.s32.totalorder %s136, %s137
      %p148 = scmp.eq.s32.totalorder %s23, 0
      %p149 = por %p147, %p148
      %p150 = scmp.ne.s32.totalorder %s136, %s137
      %p151 = scmp.eq.s32.totalorder %s24, 7
      %p152 = por %p150, %p151
      %p154 = scmp.ne.s32.totalorder %s137, %s153
      %p155 = scmp.eq.s32.totalorder %s24, 0
      %p156 = por %p154, %p155
      %p157 = scmp.le.s32.totalorder 1, %s18
      %p158 = scmp.lt.s32.totalorder %s18, 9
      %p159 = pnand %p157, %p158
      %p160 = pneg %p159
      // Predicated region
      $region9: #{tpu_custom_call.1} parent=5 // pred_check
        _
      $region10: #{tpu_custom_call.1} parent=5 // pred_check_branch
        %162 = sbr.rel (%p159) target = $region12
      $region11: #{tpu_custom_call.1} parent=5 // pred_region
        %s163 = ssub.s32 %s18, 1
      $region12: #{tpu_custom_call.1} parent=5 // pred_fallthru
        _
      %p164 = scmp.lt.s32.totalorder %s18, 8
      // Predicated region
      $region13: #{tpu_custom_call.1} parent=5 // pred_check
        %p165 = pneg %p164
      $region14: #{tpu_custom_call.1} parent=5 // pred_check_branch
        %167 = sbr.rel (%p165) target = $region16
      $region15: #{tpu_custom_call.1} parent=5 // pred_region
        // Predicated region
        $region17: #{tpu_custom_call.1} parent=15 // pred_check
          %p168 = pneg %p59
        $region18: #{tpu_custom_call.1} parent=15 // pred_check_branch
          %170 = sbr.rel (%p168) target = $region20
        $region19: #{tpu_custom_call.1} parent=15 // pred_region
          #allocation13 [shape = 'u32[6]{0}', space=smem, size = 0x18, scoped, tag = 'DMA stride descriptor']
          %s171 = sand.u32 %s49, 1
          %s172 = scalar_lea.sflag [#allocation6], %s171
          %s173 = sand.u32 %s49, 1
          %s174 = smul.addr %s173, 128
          %s175 = scalar_lea.vmem [#allocation5], %s174
          %s176 = smul.u32 2, %s25
          %s177 = smul.u32 16, %s26
          %179 = vsyncadd %s172, 0
          %s180 = smul.addr %s176, 32
          %s181 = sadd.s32 %s177, %s180
          %s182 = smul.addr %s181, 4
          %s183 = scalar_lea.hbm %s0, %s182
          %s185 = sshll.u32 1, 14
          %s186 = sxor.u32 4294967295, %s185
          %s188 = sld [smem:[#allocation0]]
          %s189 = sadd.s32 2, %s188
          %s191 = sshll.u32 7, 26
          %s192 = sxor.u32 4294967295, %s191
          %s193 = sand.u32 0, %s192
          %s194 = sshll.u32 %s189, 26
          %s195 = sor.u32 %s193, %s194
          %s196 = sshll.u32 %s183, 4
          %s197 = int_to_ptr.hbm [resolvable:$true] %s196
          %s198 = sshll.u32 %s175, 4
          %s199 = int_to_ptr.vmem [resolvable:$true] %s198
          %205 = sst [smem:[#allocation13]] 2048
          %s206 = scalar_lea.smem [#allocation13], 1
          %207 = sst [smem:[%s206]] 1024
          %s208 = scalar_lea.smem [#allocation13], 2
          %209 = sst [smem:[%s208]] 16
          %s210 = scalar_lea.smem [#allocation13], 3
          %211 = sst [smem:[%s210]] 64
          %s212 = scalar_lea.smem [#allocation13], 4
          %213 = sst [smem:[%s212]] 64
          %s214 = scalar_lea.smem [#allocation13], 5
          %215 = sst [smem:[%s214]] 4
          %217 = dma.general %s197, 2048, %s199, %s172, [#allocation12], [#allocation13], %s195, 0
        $region20: #{tpu_custom_call.1} parent=15 // pred_fallthru
          _
        // Predicated region
        $region21: #{tpu_custom_call.1} parent=15 // pred_check
          %p218 = pneg %p87
        $region22: #{tpu_custom_call.1} parent=15 // pred_check_branch
          %220 = sbr.rel (%p218) target = $region24
        $region23: #{tpu_custom_call.1} parent=15 // pred_region
          #allocation15 [shape = 'u32[6]{0}', space=smem, size = 0x18, scoped, tag = 'DMA stride descriptor']
          %s221 = sand.u32 %s18, 1
          %s222 = scalar_lea.sflag [#allocation9], %s221
          %s223 = sand.u32 %s77, 1
          %s224 = smul.addr %s223, 128
          %s225 = scalar_lea.vmem [#allocation8], %s224
          %s226 = smul.u32 2, %s25
          %s227 = smul.u32 16, %s27
          %229 = vsyncadd %s222, 0
          %s230 = smul.addr %s226, 32
          %s231 = sadd.s32 %s227, %s230
          %s232 = smul.addr %s231, 4
          %s233 = scalar_lea.hbm %s1, %s232
          %s235 = sshll.u32 1, 14
          %s236 = sxor.u32 4294967295, %s235
          %s238 = sld [smem:[#allocation0]]
          %s239 = sadd.s32 2, %s238
          %s241 = sshll.u32 7, 26
          %s242 = sxor.u32 4294967295, %s241
          %s243 = sand.u32 0, %s242
          %s244 = sshll.u32 %s239, 26
          %s245 = sor.u32 %s243, %s244
          %s246 = sshll.u32 %s233, 4
          %s247 = int_to_ptr.hbm [resolvable:$true] %s246
          %s248 = sshll.u32 %s225, 4
          %s249 = int_to_ptr.vmem [resolvable:$true] %s248
          %255 = sst [smem:[#allocation15]] 2048
          %s256 = scalar_lea.smem [#allocation15], 1
          %257 = sst [smem:[%s256]] 1024
          %s258 = scalar_lea.smem [#allocation15], 2
          %259 = sst [smem:[%s258]] 16
          %s260 = scalar_lea.smem [#allocation15], 3
          %261 = sst [smem:[%s260]] 64
          %s262 = scalar_lea.smem [#allocation15], 4
          %263 = sst [smem:[%s262]] 64
          %s264 = scalar_lea.smem [#allocation15], 5
          %265 = sst [smem:[%s264]] 4
          %267 = dma.general %s247, 2048, %s249, %s222, [#allocation14], [#allocation15], %s245, 0
        $region24: #{tpu_custom_call.1} parent=15 // pred_fallthru
          _
        // Predicated region
        $region25: #{tpu_custom_call.1} parent=15 // pred_check
          %p268 = pneg %p115
        $region26: #{tpu_custom_call.1} parent=15 // pred_check_branch
          %270 = sbr.rel (%p268) target = $region28
        $region27: #{tpu_custom_call.1} parent=15 // pred_region
          #allocation17 [shape = 'u32[6]{0}', space=smem, size = 0x18, scoped, tag = 'DMA stride descriptor']
          %s271 = sand.u32 %s18, 1
          %s272 = scalar_lea.sflag [#allocation9], %s271
          %s273 = sand.u32 %s105, 1
          %s274 = smul.addr %s273, 128
          %s275 = scalar_lea.vmem [#allocation10], %s274
          %s276 = smul.u32 2, %s25
          %s277 = smul.u32 16, %s27
          %279 = vsyncadd %s272, 0
          %s280 = smul.addr %s276, 32
          %s281 = sadd.s32 %s277, %s280
          %s282 = smul.addr %s281, 4
          %s283 = scalar_lea.hbm %s2, %s282
          %s285 = sshll.u32 1, 14
          %s286 = sxor.u32 4294967295, %s285
          %s288 = sld [smem:[#allocation0]]
          %s289 = sadd.s32 2, %s288
          %s291 = sshll.u32 7, 26
          %s292 = sxor.u32 4294967295, %s291
          %s293 = sand.u32 0, %s292
          %s294 = sshll.u32 %s289, 26
          %s295 = sor.u32 %s293, %s294
          %s296 = sshll.u32 %s283, 4
          %s297 = int_to_ptr.hbm [resolvable:$true] %s296
          %s298 = sshll.u32 %s275, 4
          %s299 = int_to_ptr.vmem [resolvable:$true] %s298
          %305 = sst [smem:[#allocation17]] 2048
          %s306 = scalar_lea.smem [#allocation17], 1
          %307 = sst [smem:[%s306]] 1024
          %s308 = scalar_lea.smem [#allocation17], 2
          %309 = sst [smem:[%s308]] 16
          %s310 = scalar_lea.smem [#allocation17], 3
          %311 = sst [smem:[%s310]] 64
          %s312 = scalar_lea.smem [#allocation17], 4
          %313 = sst [smem:[%s312]] 64
          %s314 = scalar_lea.smem [#allocation17], 5
          %315 = sst [smem:[%s314]] 4
          %317 = dma.general %s297, 2048, %s299, %s272, [#allocation16], [#allocation17], %s295, 0
        $region28: #{tpu_custom_call.1} parent=15 // pred_fallthru
          _
      $region16: #{tpu_custom_call.1} parent=5 // pred_fallthru
        _
      %p318 = scmp.le.s32.totalorder 1, %s18
      %p319 = scmp.lt.s32.totalorder %s18, 9
      %p320 = pnand %p318, %p319
      %p321 = pneg %p320
      // Predicated region
      $region29: #{tpu_custom_call.1} parent=5 // pred_check
        _
      $region30: #{tpu_custom_call.1} parent=5 // pred_check_branch
        %323 = sbr.rel (%p320) target = $region32
      $region31: #{tpu_custom_call.1} parent=5 // pred_region
        %s324 = ssub.s32 %s18, 1
        %s325 = sand.u32 %s52, 1
        %s326 = scalar_lea.sflag [#allocation6], %s325
        %s327 = sand.u32 %s52, 1
        %s328 = smul.addr %s327, 128
        %s329 = scalar_lea.vmem [#allocation5], %s328
        // Predicated region
        $region33: #{tpu_custom_call.1} parent=31 // pred_check
          %p330 = pneg %p65
        $region34: #{tpu_custom_call.1} parent=31 // pred_check_branch
          %332 = sbr.rel (%p330) target = $region36
        $region35: #{tpu_custom_call.1} parent=31 // pred_region
          %334 = dma.done %s326, 2048
        $region36: #{tpu_custom_call.1} parent=31 // pred_fallthru
          _
        %s335 = sand.u32 %s23, 1
        %s336 = scalar_lea.sflag [#allocation9], %s335
        %s337 = sand.u32 %s80, 1
        %s338 = smul.addr %s337, 128
        %s339 = scalar_lea.vmem [#allocation8], %s338
        // Predicated region
        $region37: #{tpu_custom_call.1} parent=31 // pred_check
          %p340 = pneg %p93
        $region38: #{tpu_custom_call.1} parent=31 // pred_check_branch
          %342 = sbr.rel (%p340) target = $region40
        $region39: #{tpu_custom_call.1} parent=31 // pred_region
          %344 = dma.done %s336, 2048
        $region40: #{tpu_custom_call.1} parent=31 // pred_fallthru
          _
        %s345 = sand.u32 %s23, 1
        %s346 = scalar_lea.sflag [#allocation9], %s345
        %s347 = sand.u32 %s108, 1
        %s348 = smul.addr %s347, 128
        %s349 = scalar_lea.vmem [#allocation10], %s348
        // Predicated region
        $region41: #{tpu_custom_call.1} parent=31 // pred_check
          %p350 = pneg %p121
        $region42: #{tpu_custom_call.1} parent=31 // pred_check_branch
          %352 = sbr.rel (%p350) target = $region44
        $region43: #{tpu_custom_call.1} parent=31 // pred_region
          %354 = dma.done %s346, 2048
        $region44: #{tpu_custom_call.1} parent=31 // pred_fallthru
          _
        %s355 = sand.u32 %s52, 1
        %s356 = scalar_lea.sflag [#allocation6], %s355
        %s357 = sand.u32 %s52, 1
        %s358 = smul.addr %s357, 128
        %s359 = scalar_lea.vmem [#allocation5], %s358
        %p360 = pneg %p65
        %p361 = pneg %p62
        %s362 = sand.u32 %s23, 1
        %s363 = scalar_lea.sflag [#allocation9], %s362
        %s364 = sand.u32 %s80, 1
        %s365 = smul.addr %s364, 128
        %s366 = scalar_lea.vmem [#allocation8], %s365
        %p367 = pneg %p93
        %p368 = pneg %p90
        %s369 = sand.u32 %s23, 1
        %s370 = scalar_lea.sflag [#allocation9], %s369
        %s371 = sand.u32 %s108, 1
        %s372 = smul.addr %s371, 128
        %s373 = scalar_lea.vmem [#allocation10], %s372
        %p374 = pneg %p121
        %p375 = pneg %p118
        %p376 = pneg %p149
        %p377 = pneg %p146
        %s378 = sand.u32 %s136, 1
        %s379 = scalar_lea.sflag [#allocation7], %s378
        %s380 = sand.u32 %s136, 1
        %s381 = smul.addr %s380, 256
        %s382 = scalar_lea.vmem [#allocation11], %s381
        %s383 = smul.u32 2, %s28
        %s384 = smul.u32 16, %s29
        %s385 = smul.u32 2, %s28
        %s386 = smul.u32 16, %s30
        %s387 = smul.u32 2, %s28
        %s388 = smul.u32 16, %s30
        %s389 = smul.u32 2, %s28
        %s390 = smul.u32 16, %s29
        %p391 = scmp.eq.s32.totalorder %s30, 0
        // Predicated region
        $region45: #{tpu_custom_call.1} parent=31 // pred_check
          %p392 = pneg %p391
        $region46: #{tpu_custom_call.1} parent=31 // pred_check_branch
          %394 = sbr.rel (%p392) target = $region48
        $region47: #{tpu_custom_call.1} parent=31 // pred_region
          %vm395 = vcmask 7168
          %396 = vst.msk [vmem:[#allocation2] sm:$0xff] %vm395, -inf
          %397 = vst.msk [vmem:[#allocation2 + $0x8] sm:$0xff] %vm395, -inf
          %398 = vst.msk [vmem:[#allocation2 + $0x10] sm:$0xff] %vm395, -inf
          %399 = vst.msk [vmem:[#allocation2 + $0x18] sm:$0xff] %vm395, -inf
          %400 = vst.msk [vmem:[#allocation2 + $0x20] sm:$0xff] %vm395, -inf
          %401 = vst.msk [vmem:[#allocation2 + $0x28] sm:$0xff] %vm395, -inf
          %402 = vst.msk [vmem:[#allocation2 + $0x30] sm:$0xff] %vm395, -inf
          %403 = vst.msk [vmem:[#allocation2 + $0x38] sm:$0xff] %vm395, -inf
          %404 = vst.msk [vmem:[#allocation2 + $0x40] sm:$0xff] %vm395, -inf
          %405 = vst.msk [vmem:[#allocation2 + $0x48] sm:$0xff] %vm395, -inf
          %406 = vst.msk [vmem:[#allocation2 + $0x50] sm:$0xff] %vm395, -inf
          %407 = vst.msk [vmem:[#allocation2 + $0x58] sm:$0xff] %vm395, -inf
          %408 = vst.msk [vmem:[#allocation2 + $0x60] sm:$0xff] %vm395, -inf
          %409 = vst.msk [vmem:[#allocation2 + $0x68] sm:$0xff] %vm395, -inf
          %410 = vst.msk [vmem:[#allocation2 + $0x70] sm:$0xff] %vm395, -inf
          %411 = vst.msk [vmem:[#allocation2 + $0x78] sm:$0xff] %vm395, -inf
          %412 = vst.msk [vmem:[#allocation2 + $0x80] sm:$0xff] %vm395, -inf
          %413 = vst.msk [vmem:[#allocation2 + $0x88] sm:$0xff] %vm395, -inf
          %414 = vst.msk [vmem:[#allocation2 + $0x90] sm:$0xff] %vm395, -inf
          %415 = vst.msk [vmem:[#allocation2 + $0x98] sm:$0xff] %vm395, -inf
          %416 = vst.msk [vmem:[#allocation2 + $0xa0] sm:$0xff] %vm395, -inf
          %417 = vst.msk [vmem:[#allocation2 + $0xa8] sm:$0xff] %vm395, -inf
          %418 = vst.msk [vmem:[#allocation2 + $0xb0] sm:$0xff] %vm395, -inf
          %419 = vst.msk [vmem:[#allocation2 + $0xb8] sm:$0xff] %vm395, -inf
          %420 = vst.msk [vmem:[#allocation2 + $0xc0] sm:$0xff] %vm395, -inf
          %421 = vst.msk [vmem:[#allocation2 + $0xc8] sm:$0xff] %vm395, -inf
          %422 = vst.msk [vmem:[#allocation2 + $0xd0] sm:$0xff] %vm395, -inf
          %423 = vst.msk [vmem:[#allocation2 + $0xd8] sm:$0xff] %vm395, -inf
          %424 = vst.msk [vmem:[#allocation2 + $0xe0] sm:$0xff] %vm395, -inf
          %425 = vst.msk [vmem:[#allocation2 + $0xe8] sm:$0xff] %vm395, -inf
          %426 = vst.msk [vmem:[#allocation2 + $0xf0] sm:$0xff] %vm395, -inf
          %427 = vst.msk [vmem:[#allocation2 + $0xf8] sm:$0xff] %vm395, -inf
          %428 = vst.msk [vmem:[#allocation3] sm:$0xff] %vm395, 0.0
          %429 = vst.msk [vmem:[#allocation3 + $0x8] sm:$0xff] %vm395, 0.0
          %430 = vst.msk [vmem:[#allocation3 + $0x10] sm:$0xff] %vm395, 0.0
          %431 = vst.msk [vmem:[#allocation3 + $0x18] sm:$0xff] %vm395, 0.0
          %432 = vst.msk [vmem:[#allocation3 + $0x20] sm:$0xff] %vm395, 0.0
          %433 = vst.msk [vmem:[#allocation3 + $0x28] sm:$0xff] %vm395, 0.0
          %434 = vst.msk [vmem:[#allocation3 + $0x30] sm:$0xff] %vm395, 0.0
          %435 = vst.msk [vmem:[#allocation3 + $0x38] sm:$0xff] %vm395, 0.0
          %436 = vst.msk [vmem:[#allocation3 + $0x40] sm:$0xff] %vm395, 0.0
          %437 = vst.msk [vmem:[#allocation3 + $0x48] sm:$0xff] %vm395, 0.0
          %438 = vst.msk [vmem:[#allocation3 + $0x50] sm:$0xff] %vm395, 0.0
          %439 = vst.msk [vmem:[#allocation3 + $0x58] sm:$0xff] %vm395, 0.0
          %440 = vst.msk [vmem:[#allocation3 + $0x60] sm:$0xff] %vm395, 0.0
          %441 = vst.msk [vmem:[#allocation3 + $0x68] sm:$0xff] %vm395, 0.0
          %442 = vst.msk [vmem:[#allocation3 + $0x70] sm:$0xff] %vm395, 0.0
          %443 = vst.msk [vmem:[#allocation3 + $0x78] sm:$0xff] %vm395, 0.0
          %444 = vst.msk [vmem:[#allocation3 + $0x80] sm:$0xff] %vm395, 0.0
          %445 = vst.msk [vmem:[#allocation3 + $0x88] sm:$0xff] %vm395, 0.0
          %446 = vst.msk [vmem:[#allocation3 + $0x90] sm:$0xff] %vm395, 0.0
          %447 = vst.msk [vmem:[#allocation3 + $0x98] sm:$0xff] %vm395, 0.0
          %448 = vst.msk [vmem:[#allocation3 + $0xa0] sm:$0xff] %vm395, 0.0
          %449 = vst.msk [vmem:[#allocation3 + $0xa8] sm:$0xff] %vm395, 0.0
          %450 = vst.msk [vmem:[#allocation3 + $0xb0] sm:$0xff] %vm395, 0.0
          %451 = vst.msk [vmem:[#allocation3 + $0xb8] sm:$0xff] %vm395, 0.0
          %452 = vst.msk [vmem:[#allocation3 + $0xc0] sm:$0xff] %vm395, 0.0
          %453 = vst.msk [vmem:[#allocation3 + $0xc8] sm:$0xff] %vm395, 0.0
          %454 = vst.msk [vmem:[#allocation3 + $0xd0] sm:$0xff] %vm395, 0.0
          %455 = vst.msk [vmem:[#allocation3 + $0xd8] sm:$0xff] %vm395, 0.0
          %456 = vst.msk [vmem:[#allocation3 + $0xe0] sm:$0xff] %vm395, 0.0
          %457 = vst.msk [vmem:[#allocation3 + $0xe8] sm:$0xff] %vm395, 0.0
          %458 = vst.msk [vmem:[#allocation3 + $0xf0] sm:$0xff] %vm395, 0.0
          %459 = vst.msk [vmem:[#allocation3 + $0xf8] sm:$0xff] %vm395, 0.0
          %460 = vst [vmem:[#allocation4] sm:$0xff] 0.0
          %461 = vst [vmem:[#allocation4 + $0x8] sm:$0xff] 0.0
          %462 = vst [vmem:[#allocation4 + $0x10] sm:$0xff] 0.0
          %463 = vst [vmem:[#allocation4 + $0x18] sm:$0xff] 0.0
          %464 = vst [vmem:[#allocation4 + $0x20] sm:$0xff] 0.0
          %465 = vst [vmem:[#allocation4 + $0x28] sm:$0xff] 0.0
          %466 = vst [vmem:[#allocation4 + $0x30] sm:$0xff] 0.0
          %467 = vst [vmem:[#allocation4 + $0x38] sm:$0xff] 0.0
          %468 = vst [vmem:[#allocation4 + $0x40] sm:$0xff] 0.0
          %469 = vst [vmem:[#allocation4 + $0x48] sm:$0xff] 0.0
          %470 = vst [vmem:[#allocation4 + $0x50] sm:$0xff] 0.0
          %471 = vst [vmem:[#allocation4 + $0x58] sm:$0xff] 0.0
          %472 = vst [vmem:[#allocation4 + $0x60] sm:$0xff] 0.0
          %473 = vst [vmem:[#allocation4 + $0x68] sm:$0xff] 0.0
          %474 = vst [vmem:[#allocation4 + $0x70] sm:$0xff] 0.0
          %475 = vst [vmem:[#allocation4 + $0x78] sm:$0xff] 0.0
          %476 = vst [vmem:[#allocation4 + $0x80] sm:$0xff] 0.0
          %477 = vst [vmem:[#allocation4 + $0x88] sm:$0xff] 0.0
          %478 = vst [vmem:[#allocation4 + $0x90] sm:$0xff] 0.0
          %479 = vst [vmem:[#allocation4 + $0x98] sm:$0xff] 0.0
          %480 = vst [vmem:[#allocation4 + $0xa0] sm:$0xff] 0.0
          %481 = vst [vmem:[#allocation4 + $0xa8] sm:$0xff] 0.0
          %482 = vst [vmem:[#allocation4 + $0xb0] sm:$0xff] 0.0
          %483 = vst [vmem:[#allocation4 + $0xb8] sm:$0xff] 0.0
          %484 = vst [vmem:[#allocation4 + $0xc0] sm:$0xff] 0.0
          %485 = vst [vmem:[#allocation4 + $0xc8] sm:$0xff] 0.0
          %486 = vst [vmem:[#allocation4 + $0xd0] sm:$0xff] 0.0
          %487 = vst [vmem:[#allocation4 + $0xd8] sm:$0xff] 0.0
          %488 = vst [vmem:[#allocation4 + $0xe0] sm:$0xff] 0.0
          %489 = vst [vmem:[#allocation4 + $0xe8] sm:$0xff] 0.0
          %490 = vst [vmem:[#allocation4 + $0xf0] sm:$0xff] 0.0
          %491 = vst [vmem:[#allocation4 + $0xf8] sm:$0xff] 0.0
        $region48: #{tpu_custom_call.1} parent=31 // pred_fallthru
          _
        %v492 = vld [vmem:[%s329] sm:$0xf]
        %v493 = vld [vmem:[%s329 + $0x4] sm:$0xf]
        %v494 = vld [vmem:[%s329 + $0x8] sm:$0xf]
        %v495 = vld [vmem:[%s329 + $0xc] sm:$0xf]
        %v496 = vld [vmem:[%s329 + $0x10] sm:$0xf]
        %v497 = vld [vmem:[%s329 + $0x14] sm:$0xf]
        %v498 = vld [vmem:[%s329 + $0x18] sm:$0xf]
        %v499 = vld [vmem:[%s329 + $0x1c] sm:$0xf]
        %v500 = vld [vmem:[%s329 + $0x20] sm:$0xf]
        %v501 = vld [vmem:[%s329 + $0x24] sm:$0xf]
        %v502 = vld [vmem:[%s329 + $0x28] sm:$0xf]
        %v503 = vld [vmem:[%s329 + $0x2c] sm:$0xf]
        %v504 = vld [vmem:[%s329 + $0x30] sm:$0xf]
        %v505 = vld [vmem:[%s329 + $0x34] sm:$0xf]
        %v506 = vld [vmem:[%s329 + $0x38] sm:$0xf]
        %v507 = vld [vmem:[%s329 + $0x3c] sm:$0xf]
        %v508 = vld [vmem:[%s329 + $0x40] sm:$0xf]
        %v509 = vld [vmem:[%s329 + $0x44] sm:$0xf]
        %v510 = vld [vmem:[%s329 + $0x48] sm:$0xf]
        %v511 = vld [vmem:[%s329 + $0x4c] sm:$0xf]
        %v512 = vld [vmem:[%s329 + $0x50] sm:$0xf]
        %v513 = vld [vmem:[%s329 + $0x54] sm:$0xf]
        %v514 = vld [vmem:[%s329 + $0x58] sm:$0xf]
        %v515 = vld [vmem:[%s329 + $0x5c] sm:$0xf]
        %v516 = vld [vmem:[%s329 + $0x60] sm:$0xf]
        %v517 = vld [vmem:[%s329 + $0x64] sm:$0xf]
        %v518 = vld [vmem:[%s329 + $0x68] sm:$0xf]
        %v519 = vld [vmem:[%s329 + $0x6c] sm:$0xf]
        %v520 = vld [vmem:[%s329 + $0x70] sm:$0xf]
        %v521 = vld [vmem:[%s329 + $0x74] sm:$0xf]
        %v522 = vld [vmem:[%s329 + $0x78] sm:$0xf]
        %v523 = vld [vmem:[%s329 + $0x7c] sm:$0xf]
        %v524 = vld [vmem:[%s339] sm:$0xf]
        %v525 = vld [vmem:[%s339 + $0x4] sm:$0xf]
        %v526 = vld [vmem:[%s339 + $0x8] sm:$0xf]
        %v527 = vld [vmem:[%s339 + $0xc] sm:$0xf]
        %v528 = vld [vmem:[%s339 + $0x10] sm:$0xf]
        %v529 = vld [vmem:[%s339 + $0x14] sm:$0xf]
        %v530 = vld [vmem:[%s339 + $0x18] sm:$0xf]
        %v531 = vld [vmem:[%s339 + $0x1c] sm:$0xf]
        %v532 = vld [vmem:[%s339 + $0x20] sm:$0xf]
        %v533 = vld [vmem:[%s339 + $0x24] sm:$0xf]
        %v534 = vld [vmem:[%s339 + $0x28] sm:$0xf]
        %v535 = vld [vmem:[%s339 + $0x2c] sm:$0xf]
        %v536 = vld [vmem:[%s339 + $0x30] sm:$0xf]
        %v537 = vld [vmem:[%s339 + $0x34] sm:$0xf]
        %v538 = vld [vmem:[%s339 + $0x38] sm:$0xf]
        %v539 = vld [vmem:[%s339 + $0x3c] sm:$0xf]
        %v540 = vld [vmem:[%s339 + $0x40] sm:$0xf]
        %v541 = vld [vmem:[%s339 + $0x44] sm:$0xf]
        %v542 = vld [vmem:[%s339 + $0x48] sm:$0xf]
        %v543 = vld [vmem:[%s339 + $0x4c] sm:$0xf]
        %v544 = vld [vmem:[%s339 + $0x50] sm:$0xf]
        %v545 = vld [vmem:[%s339 + $0x54] sm:$0xf]
        %v546 = vld [vmem:[%s339 + $0x58] sm:$0xf]
        %v547 = vld [vmem:[%s339 + $0x5c] sm:$0xf]
        %v548 = vld [vmem:[%s339 + $0x60] sm:$0xf]
        %v549 = vld [vmem:[%s339 + $0x64] sm:$0xf]
        %v550 = vld [vmem:[%s339 + $0x68] sm:$0xf]
        %v551 = vld [vmem:[%s339 + $0x6c] sm:$0xf]
        %v552 = vld [vmem:[%s339 + $0x70] sm:$0xf]
        %v553 = vld [vmem:[%s339 + $0x74] sm:$0xf]
        %v554 = vld [vmem:[%s339 + $0x78] sm:$0xf]
        %v555 = vld [vmem:[%s339 + $0x7c] sm:$0xf]
        %v572 = vunpack.c.l.b16 %v492
        %v573 = vunpack.c.l.b16 %v493
        %v574 = vunpack.c.l.b16 %v494
        %v575 = vunpack.c.l.b16 %v495
        %v576 = vunpack.c.l.b16 %v496
        %v577 = vunpack.c.l.b16 %v497
        %v578 = vunpack.c.l.b16 %v498
        %v579 = vunpack.c.l.b16 %v499
        %v580 = vunpack.c.l.b16 %v500
        %v581 = vunpack.c.l.b16 %v501
        %v582 = vunpack.c.l.b16 %v502
        %v583 = vunpack.c.l.b16 %v503
        %v584 = vunpack.c.l.b16 %v504
        %v585 = vunpack.c.l.b16 %v505
        %v586 = vunpack.c.l.b16 %v506
        %v587 = vunpack.c.l.b16 %v507
        %v588 = vpack.c.b16 %v573, %v572
        %v589 = vpack.c.b16 %v575, %v574
        %v590 = vpack.c.b16 %v577, %v576
        %v591 = vpack.c.b16 %v579, %v578
        %v592 = vpack.c.b16 %v581, %v580
        %v593 = vpack.c.b16 %v583, %v582
        %v594 = vpack.c.b16 %v585, %v584
        %v595 = vpack.c.b16 %v587, %v586
        %v620 = vunpack.c.l.b16 %v524
        %v621 = vunpack.c.l.b16 %v525
        %v622 = vunpack.c.l.b16 %v526
        %v623 = vunpack.c.l.b16 %v527
        %v624 = vunpack.c.l.b16 %v528
        %v625 = vunpack.c.l.b16 %v529
        %v626 = vunpack.c.l.b16 %v530
        %v627 = vunpack.c.l.b16 %v531
        %v628 = vunpack.c.l.b16 %v532
        %v629 = vunpack.c.l.b16 %v533
        %v630 = vunpack.c.l.b16 %v534
        %v631 = vunpack.c.l.b16 %v535
        %v632 = vunpack.c.l.b16 %v536
        %v633 = vunpack.c.l.b16 %v537
        %v634 = vunpack.c.l.b16 %v538
        %v635 = vunpack.c.l.b16 %v539
        %v636 = vpack.c.b16 %v621, %v620
        %v637 = vpack.c.b16 %v623, %v622
        %v638 = vpack.c.b16 %v625, %v624
        %v639 = vpack.c.b16 %v627, %v626
        %v640 = vpack.c.b16 %v629, %v628
        %v641 = vpack.c.b16 %v631, %v630
        %v642 = vpack.c.b16 %v633, %v632
        %v643 = vpack.c.b16 %v635, %v634
        %652 = vmatpush.bf16.xpose.msra.mxu0 %v643
        %653 = vmatpush.bf16.xpose.msra.mxu0 %v642
        %654 = vmatpush.bf16.xpose.msra.mxu0 %v641
        %655 = vmatpush.bf16.xpose.msra.mxu0 %v640
        %656 = vmatpush.bf16.xpose.msra.mxu0 %v639
        %657 = vmatpush.bf16.xpose.msra.mxu0 %v638
        %658 = vmatpush.bf16.xpose.msra.mxu0 %v637
        %659 = vmatpush.bf16.xpose.msra.mxu0 %v636
        %660 = vmatmul.bf16.gmra.mxu0 %v588
        %v661 = vpop.f32.mrf.mxu0
        %v662 = vadd.f32 0.0, %v661
        %v663 = vpop.f32.mrf.mxu0
        %v664 = vadd.f32 0.0, %v663
        %665 = vmatmul.bf16.gmra.mxu0 %v589
        %v666 = vpop.f32.mrf.mxu0
        %v667 = vadd.f32 0.0, %v666
        %v668 = vpop.f32.mrf.mxu0
        %v669 = vadd.f32 0.0, %v668
        %670 = vmatmul.bf16.gmra.mxu0 %v590
        %v671 = vpop.f32.mrf.mxu0
        %v672 = vadd.f32 0.0, %v671
        %v673 = vpop.f32.mrf.mxu0
        %v674 = vadd.f32 0.0, %v673
        %675 = vmatmul.bf16.gmra.mxu0 %v591
        %v676 = vpop.f32.mrf.mxu0
        %v677 = vadd.f32 0.0, %v676
        %v678 = vpop.f32.mrf.mxu0
        %v679 = vadd.f32 0.0, %v678
        %680 = vmatmul.bf16.gmra.mxu0 %v592
        %v681 = vpop.f32.mrf.mxu0
        %v682 = vadd.f32 0.0, %v681
        %v683 = vpop.f32.mrf.mxu0
        %v684 = vadd.f32 0.0, %v683
        %685 = vmatmul.bf16.gmra.mxu0 %v593
        %v686 = vpop.f32.mrf.mxu0
        %v687 = vadd.f32 0.0, %v686
        %v688 = vpop.f32.mrf.mxu0
        %v689 = vadd.f32 0.0, %v688
        %690 = vmatmul.bf16.gmra.mxu0 %v594
        %v691 = vpop.f32.mrf.mxu0
        %v692 = vadd.f32 0.0, %v691
        %v693 = vpop.f32.mrf.mxu0
        %v694 = vadd.f32 0.0, %v693
        %695 = vmatmul.bf16.gmra.mxu0 %v595
        %v696 = vpop.f32.mrf.mxu0
        %v697 = vadd.f32 0.0, %v696
        %v698 = vpop.f32.mrf.mxu0
        %v699 = vadd.f32 0.0, %v698
        %700 = vdwg.mxu0
        %v717 = vunpack.c.l.b16 %v508
        %v718 = vunpack.c.l.b16 %v509
        %v719 = vunpack.c.l.b16 %v510
        %v720 = vunpack.c.l.b16 %v511
        %v721 = vunpack.c.l.b16 %v512
        %v722 = vunpack.c.l.b16 %v513
        %v723 = vunpack.c.l.b16 %v514
        %v724 = vunpack.c.l.b16 %v515
        %v725 = vunpack.c.l.b16 %v516
        %v726 = vunpack.c.l.b16 %v517
        %v727 = vunpack.c.l.b16 %v518
        %v728 = vunpack.c.l.b16 %v519
        %v729 = vunpack.c.l.b16 %v520
        %v730 = vunpack.c.l.b16 %v521
        %v731 = vunpack.c.l.b16 %v522
        %v732 = vunpack.c.l.b16 %v523
        %v733 = vpack.c.b16 %v718, %v717
        %v734 = vpack.c.b16 %v720, %v719
        %v735 = vpack.c.b16 %v722, %v721
        %v736 = vpack.c.b16 %v724, %v723
        %v737 = vpack.c.b16 %v726, %v725
        %v738 = vpack.c.b16 %v728, %v727
        %v739 = vpack.c.b16 %v730, %v729
        %v740 = vpack.c.b16 %v732, %v731
        %v765 = vunpack.c.l.b16 %v540
        %v766 = vunpack.c.l.b16 %v541
        %v767 = vunpack.c.l.b16 %v542
        %v768 = vunpack.c.l.b16 %v543
        %v769 = vunpack.c.l.b16 %v544
        %v770 = vunpack.c.l.b16 %v545
        %v771 = vunpack.c.l.b16 %v546
        %v772 = vunpack.c.l.b16 %v547
        %v773 = vunpack.c.l.b16 %v548
        %v774 = vunpack.c.l.b16 %v549
        %v775 = vunpack.c.l.b16 %v550
        %v776 = vunpack.c.l.b16 %v551
        %v777 = vunpack.c.l.b16 %v552
        %v778 = vunpack.c.l.b16 %v553
        %v779 = vunpack.c.l.b16 %v554
        %v780 = vunpack.c.l.b16 %v555
        %v781 = vpack.c.b16 %v766, %v765
        %v782 = vpack.c.b16 %v768, %v767
        %v783 = vpack.c.b16 %v770, %v769
        %v784 = vpack.c.b16 %v772, %v771
        %v785 = vpack.c.b16 %v774, %v773
        %v786 = vpack.c.b16 %v776, %v775
        %v787 = vpack.c.b16 %v778, %v777
        %v788 = vpack.c.b16 %v780, %v779
        %797 = vmatpush.bf16.xpose.msra.mxu0 %v788
        %798 = vmatpush.bf16.xpose.msra.mxu0 %v787
        %799 = vmatpush.bf16.xpose.msra.mxu0 %v786
        %800 = vmatpush.bf16.xpose.msra.mxu0 %v785
        %801 = vmatpush.bf16.xpose.msra.mxu0 %v784
        %802 = vmatpush.bf16.xpose.msra.mxu0 %v783
        %803 = vmatpush.bf16.xpose.msra.mxu0 %v782
        %804 = vmatpush.bf16.xpose.msra.mxu0 %v781
        %805 = vmatmul.bf16.gmra.mxu0 %v733
        %v806 = vpop.f32.mrf.mxu0
        %v807 = vadd.f32 0.0, %v806
        %v808 = vpop.f32.mrf.mxu0
        %v809 = vadd.f32 0.0, %v808
        %810 = vmatmul.bf16.gmra.mxu0 %v734
        %v811 = vpop.f32.mrf.mxu0
        %v812 = vadd.f32 0.0, %v811
        %v813 = vpop.f32.mrf.mxu0
        %v814 = vadd.f32 0.0, %v813
        %815 = vmatmul.bf16.gmra.mxu0 %v735
        %v816 = vpop.f32.mrf.mxu0
        %v817 = vadd.f32 0.0, %v816
        %v818 = vpop.f32.mrf.mxu0
        %v819 = vadd.f32 0.0, %v818
        %820 = vmatmul.bf16.gmra.mxu0 %v736
        %v821 = vpop.f32.mrf.mxu0
        %v822 = vadd.f32 0.0, %v821
        %v823 = vpop.f32.mrf.mxu0
        %v824 = vadd.f32 0.0, %v823
        %825 = vmatmul.bf16.gmra.mxu0 %v737
        %v826 = vpop.f32.mrf.mxu0
        %v827 = vadd.f32 0.0, %v826
        %v828 = vpop.f32.mrf.mxu0
        %v829 = vadd.f32 0.0, %v828
        %830 = vmatmul.bf16.gmra.mxu0 %v738
        %v831 = vpop.f32.mrf.mxu0
        %v832 = vadd.f32 0.0, %v831
        %v833 = vpop.f32.mrf.mxu0
        %v834 = vadd.f32 0.0, %v833
        %835 = vmatmul.bf16.gmra.mxu0 %v739
        %v836 = vpop.f32.mrf.mxu0
        %v837 = vadd.f32 0.0, %v836
        %v838 = vpop.f32.mrf.mxu0
        %v839 = vadd.f32 0.0, %v838
        %840 = vmatmul.bf16.gmra.mxu0 %v740
        %v841 = vpop.f32.mrf.mxu0
        %v842 = vadd.f32 0.0, %v841
        %v843 = vpop.f32.mrf.mxu0
        %v844 = vadd.f32 0.0, %v843
        %845 = vdwg.mxu0
        %v846 = vmul.f32 %v662, 0.12751743
        %v847 = vmul.f32 %v664, 0.12751743
        %v848 = vmul.f32 %v667, 0.12751743
        %v849 = vmul.f32 %v669, 0.12751743
        %v850 = vmul.f32 %v672, 0.12751743
        %v851 = vmul.f32 %v674, 0.12751743
        %v852 = vmul.f32 %v677, 0.12751743
        %v853 = vmul.f32 %v679, 0.12751743
        %v854 = vmul.f32 %v682, 0.12751743
        %v855 = vmul.f32 %v684, 0.12751743
        %v856 = vmul.f32 %v687, 0.12751743
        %v857 = vmul.f32 %v689, 0.12751743
        %v858 = vmul.f32 %v692, 0.12751743
        %v859 = vmul.f32 %v694, 0.12751743
        %v860 = vmul.f32 %v697, 0.12751743
        %v861 = vmul.f32 %v699, 0.12751743
        %v862 = vmul.f32 %v807, 0.12751743
        %v863 = vmul.f32 %v809, 0.12751743
        %v864 = vmul.f32 %v812, 0.12751743
        %v865 = vmul.f32 %v814, 0.12751743
        %v866 = vmul.f32 %v817, 0.12751743
        %v867 = vmul.f32 %v819, 0.12751743
        %v868 = vmul.f32 %v822, 0.12751743
        %v869 = vmul.f32 %v824, 0.12751743
        %v870 = vmul.f32 %v827, 0.12751743
        %v871 = vmul.f32 %v829, 0.12751743
        %v872 = vmul.f32 %v832, 0.12751743
        %v873 = vmul.f32 %v834, 0.12751743
        %v874 = vmul.f32 %v837, 0.12751743
        %v875 = vmul.f32 %v839, 0.12751743
        %v876 = vmul.f32 %v842, 0.12751743
        %v877 = vmul.f32 %v844, 0.12751743
        %v878 = vld [vmem:[#allocation2] sm:$0xff]
        %v879 = vld [vmem:[#allocation2 + $0x8] sm:$0xff]
        %v880 = vld [vmem:[#allocation2 + $0x10] sm:$0xff]
        %v881 = vld [vmem:[#allocation2 + $0x18] sm:$0xff]
        %v882 = vld [vmem:[#allocation2 + $0x20] sm:$0xff]
        %v883 = vld [vmem:[#allocation2 + $0x28] sm:$0xff]
        %v884 = vld [vmem:[#allocation2 + $0x30] sm:$0xff]
        %v885 = vld [vmem:[#allocation2 + $0x38] sm:$0xff]
        %v886 = vld [vmem:[#allocation2 + $0x40] sm:$0xff]
        %v887 = vld [vmem:[#allocation2 + $0x48] sm:$0xff]
        %v888 = vld [vmem:[#allocation2 + $0x50] sm:$0xff]
        %v889 = vld [vmem:[#allocation2 + $0x58] sm:$0xff]
        %v890 = vld [vmem:[#allocation2 + $0x60] sm:$0xff]
        %v891 = vld [vmem:[#allocation2 + $0x68] sm:$0xff]
        %v892 = vld [vmem:[#allocation2 + $0x70] sm:$0xff]
        %v893 = vld [vmem:[#allocation2 + $0x78] sm:$0xff]
        %v894 = vld [vmem:[#allocation2 + $0x80] sm:$0xff]
        %v895 = vld [vmem:[#allocation2 + $0x88] sm:$0xff]
        %v896 = vld [vmem:[#allocation2 + $0x90] sm:$0xff]
        %v897 = vld [vmem:[#allocation2 + $0x98] sm:$0xff]
        %v898 = vld [vmem:[#allocation2 + $0xa0] sm:$0xff]
        %v899 = vld [vmem:[#allocation2 + $0xa8] sm:$0xff]
        %v900 = vld [vmem:[#allocation2 + $0xb0] sm:$0xff]
        %v901 = vld [vmem:[#allocation2 + $0xb8] sm:$0xff]
        %v902 = vld [vmem:[#allocation2 + $0xc0] sm:$0xff]
        %v903 = vld [vmem:[#allocation2 + $0xc8] sm:$0xff]
        %v904 = vld [vmem:[#allocation2 + $0xd0] sm:$0xff]
        %v905 = vld [vmem:[#allocation2 + $0xd8] sm:$0xff]
        %v906 = vld [vmem:[#allocation2 + $0xe0] sm:$0xff]
        %v907 = vld [vmem:[#allocation2 + $0xe8] sm:$0xff]
        %v908 = vld [vmem:[#allocation2 + $0xf0] sm:$0xff]
        %v909 = vld [vmem:[#allocation2 + $0xf8] sm:$0xff]
        %910 = vmax.xlane.f32.xlu0 %v846
        %v911 = vpop.xlane.xlu0 %910
        %912 = vmax.xlane.f32.xlu0 %v847
        %v913 = vpop.xlane.xlu0 %912
        %914 = vmax.xlane.f32.xlu0 %v848
        %v915 = vpop.xlane.xlu0 %914
        %916 = vmax.xlane.f32.xlu0 %v849
        %v917 = vpop.xlane.xlu0 %916
        %918 = vmax.xlane.f32.xlu0 %v850
        %v919 = vpop.xlane.xlu0 %918
        %920 = vmax.xlane.f32.xlu0 %v851
        %v921 = vpop.xlane.xlu0 %920
        %922 = vmax.xlane.f32.xlu0 %v852
        %v923 = vpop.xlane.xlu0 %922
        %924 = vmax.xlane.f32.xlu0 %v853
        %v925 = vpop.xlane.xlu0 %924
        %926 = vmax.xlane.f32.xlu0 %v854
        %v927 = vpop.xlane.xlu0 %926
        %928 = vmax.xlane.f32.xlu0 %v855
        %v929 = vpop.xlane.xlu0 %928
        %930 = vmax.xlane.f32.xlu0 %v856
        %v931 = vpop.xlane.xlu0 %930
        %932 = vmax.xlane.f32.xlu0 %v857
        %v933 = vpop.xlane.xlu0 %932
        %934 = vmax.xlane.f32.xlu0 %v858
        %v935 = vpop.xlane.xlu0 %934
        %936 = vmax.xlane.f32.xlu0 %v859
        %v937 = vpop.xlane.xlu0 %936
        %938 = vmax.xlane.f32.xlu0 %v860
        %v939 = vpop.xlane.xlu0 %938
        %940 = vmax.xlane.f32.xlu0 %v861
        %v941 = vpop.xlane.xlu0 %940
        %942 = vmax.xlane.f32.xlu0 %v862
        %v943 = vpop.xlane.xlu0 %942
        %944 = vmax.xlane.f32.xlu0 %v863
        %v945 = vpop.xlane.xlu0 %944
        %946 = vmax.xlane.f32.xlu0 %v864
        %v947 = vpop.xlane.xlu0 %946
        %948 = vmax.xlane.f32.xlu0 %v865
        %v949 = vpop.xlane.xlu0 %948
        %950 = vmax.xlane.f32.xlu0 %v866
        %v951 = vpop.xlane.xlu0 %950
        %952 = vmax.xlane.f32.xlu0 %v867
        %v953 = vpop.xlane.xlu0 %952
        %954 = vmax.xlane.f32.xlu0 %v868
        %v955 = vpop.xlane.xlu0 %954
        %956 = vmax.xlane.f32.xlu0 %v869
        %v957 = vpop.xlane.xlu0 %956
        %958 = vmax.xlane.f32.xlu0 %v870
        %v959 = vpop.xlane.xlu0 %958
        %960 = vmax.xlane.f32.xlu0 %v871
        %v961 = vpop.xlane.xlu0 %960
        %962 = vmax.xlane.f32.xlu0 %v872
        %v963 = vpop.xlane.xlu0 %962
        %964 = vmax.xlane.f32.xlu0 %v873
        %v965 = vpop.xlane.xlu0 %964
        %966 = vmax.xlane.f32.xlu0 %v874
        %v967 = vpop.xlane.xlu0 %966
        %968 = vmax.xlane.f32.xlu0 %v875
        %v969 = vpop.xlane.xlu0 %968
        %970 = vmax.xlane.f32.xlu0 %v876
        %v971 = vpop.xlane.xlu0 %970
        %972 = vmax.xlane.f32.xlu0 %v877
        %v973 = vpop.xlane.xlu0 %972
        %v974 = vmax.f32 %v878, %v911
        %v975 = vmax.f32 %v879, %v913
        %v976 = vmax.f32 %v880, %v915
        %v977 = vmax.f32 %v881, %v917
        %v978 = vmax.f32 %v882, %v919
        %v979 = vmax.f32 %v883, %v921
        %v980 = vmax.f32 %v884, %v923
        %v981 = vmax.f32 %v885, %v925
        %v982 = vmax.f32 %v886, %v927
        %v983 = vmax.f32 %v887, %v929
        %v984 = vmax.f32 %v888, %v931
        %v985 = vmax.f32 %v889, %v933
        %v986 = vmax.f32 %v890, %v935
        %v987 = vmax.f32 %v891, %v937
        %v988 = vmax.f32 %v892, %v939
        %v989 = vmax.f32 %v893, %v941
        %v990 = vmax.f32 %v894, %v943
        %v991 = vmax.f32 %v895, %v945
        %v992 = vmax.f32 %v896, %v947
        %v993 = vmax.f32 %v897, %v949
        %v994 = vmax.f32 %v898, %v951
        %v995 = vmax.f32 %v899, %v953
        %v996 = vmax.f32 %v900, %v955
        %v997 = vmax.f32 %v901, %v957
        %v998 = vmax.f32 %v902, %v959
        %v999 = vmax.f32 %v903, %v961
        %v1000 = vmax.f32 %v904, %v963
        %v1001 = vmax.f32 %v905, %v965
        %v1002 = vmax.f32 %v906, %v967
        %v1003 = vmax.f32 %v907, %v969
        %v1004 = vmax.f32 %v908, %v971
        %v1005 = vmax.f32 %v909, %v973
        %v1006 = vsub.f32 %v878, %v974
        %v1007 = vsub.f32 %v879, %v975
        %v1008 = vsub.f32 %v880, %v976
        %v1009 = vsub.f32 %v881, %v977
        %v1010 = vsub.f32 %v882, %v978
        %v1011 = vsub.f32 %v883, %v979
        %v1012 = vsub.f32 %v884, %v980
        %v1013 = vsub.f32 %v885, %v981
        %v1014 = vsub.f32 %v886, %v982
        %v1015 = vsub.f32 %v887, %v983
        %v1016 = vsub.f32 %v888, %v984
        %v1017 = vsub.f32 %v889, %v985
        %v1018 = vsub.f32 %v890, %v986
        %v1019 = vsub.f32 %v891, %v987
        %v1020 = vsub.f32 %v892, %v988
        %v1021 = vsub.f32 %v893, %v989
        %v1022 = vsub.f32 %v894, %v990
        %v1023 = vsub.f32 %v895, %v991
        %v1024 = vsub.f32 %v896, %v992
        %v1025 = vsub.f32 %v897, %v993
        %v1026 = vsub.f32 %v898, %v994
        %v1027 = vsub.f32 %v899, %v995
        %v1028 = vsub.f32 %v900, %v996
        %v1029 = vsub.f32 %v901, %v997
        %v1030 = vsub.f32 %v902, %v998
        %v1031 = vsub.f32 %v903, %v999
        %v1032 = vsub.f32 %v904, %v1000
        %v1033 = vsub.f32 %v905, %v1001
        %v1034 = vsub.f32 %v906, %v1002
        %v1035 = vsub.f32 %v907, %v1003
        %v1036 = vsub.f32 %v908, %v1004
        %v1037 = vsub.f32 %v909, %v1005
        %v1038 = vpow.pop %v1006
        %v1039 = vpow.pop %v1007
        %v1040 = vpow.pop %v1008
        %v1041 = vpow.pop %v1009
        %v1042 = vpow.pop %v1010
        %v1043 = vpow.pop %v1011
        %v1044 = vpow.pop %v1012
        %v1045 = vpow.pop %v1013
        %v1046 = vpow.pop %v1014
        %v1047 = vpow.pop %v1015
        %v1048 = vpow.pop %v1016
        %v1049 = vpow.pop %v1017
        %v1050 = vpow.pop %v1018
        %v1051 = vpow.pop %v1019
        %v1052 = vpow.pop %v1020
        %v1053 = vpow.pop %v1021
        %v1054 = vpow.pop %v1022
        %v1055 = vpow.pop %v1023
        %v1056 = vpow.pop %v1024
        %v1057 = vpow.pop %v1025
        %v1058 = vpow.pop %v1026
        %v1059 = vpow.pop %v1027
        %v1060 = vpow.pop %v1028
        %v1061 = vpow.pop %v1029
        %v1062 = vpow.pop %v1030
        %v1063 = vpow.pop %v1031
        %v1064 = vpow.pop %v1032
        %v1065 = vpow.pop %v1033
        %v1066 = vpow.pop %v1034
        %v1067 = vpow.pop %v1035
        %v1068 = vpow.pop %v1036
        %v1069 = vpow.pop %v1037
        %1071 = vset.pattern.permute.xlu0 0
        %1072 = vperm.xlu0 %1071, %v974
        %v1073 = vpop.permute.xlu0 %1072
        %1076 = vset.pattern.permute.xlu0 0
        %1077 = vperm.xlu0 %1076, %v975
        %v1078 = vpop.permute.xlu0 %1077
        %1081 = vset.pattern.permute.xlu0 0
        %1082 = vperm.xlu0 %1081, %v976
        %v1083 = vpop.permute.xlu0 %1082
        %1086 = vset.pattern.permute.xlu0 0
        %1087 = vperm.xlu0 %1086, %v977
        %v1088 = vpop.permute.xlu0 %1087
        %1091 = vset.pattern.permute.xlu0 0
        %1092 = vperm.xlu0 %1091, %v978
        %v1093 = vpop.permute.xlu0 %1092
        %1096 = vset.pattern.permute.xlu0 0
        %1097 = vperm.xlu0 %1096, %v979
        %v1098 = vpop.permute.xlu0 %1097
        %1101 = vset.pattern.permute.xlu0 0
        %1102 = vperm.xlu0 %1101, %v980
        %v1103 = vpop.permute.xlu0 %1102
        %1106 = vset.pattern.permute.xlu0 0
        %1107 = vperm.xlu0 %1106, %v981
        %v1108 = vpop.permute.xlu0 %1107
        %1111 = vset.pattern.permute.xlu0 0
        %1112 = vperm.xlu0 %1111, %v982
        %v1113 = vpop.permute.xlu0 %1112
        %1116 = vset.pattern.permute.xlu0 0
        %1117 = vperm.xlu0 %1116, %v983
        %v1118 = vpop.permute.xlu0 %1117
        %1121 = vset.pattern.permute.xlu0 0
        %1122 = vperm.xlu0 %1121, %v984
        %v1123 = vpop.permute.xlu0 %1122
        %1126 = vset.pattern.permute.xlu0 0
        %1127 = vperm.xlu0 %1126, %v985
        %v1128 = vpop.permute.xlu0 %1127
        %1131 = vset.pattern.permute.xlu0 0
        %1132 = vperm.xlu0 %1131, %v986
        %v1133 = vpop.permute.xlu0 %1132
        %1136 = vset.pattern.permute.xlu0 0
        %1137 = vperm.xlu0 %1136, %v987
        %v1138 = vpop.permute.xlu0 %1137
        %1141 = vset.pattern.permute.xlu0 0
        %1142 = vperm.xlu0 %1141, %v988
        %v1143 = vpop.permute.xlu0 %1142
        %1146 = vset.pattern.permute.xlu0 0
        %1147 = vperm.xlu0 %1146, %v989
        %v1148 = vpop.permute.xlu0 %1147
        %1151 = vset.pattern.permute.xlu0 0
        %1152 = vperm.xlu0 %1151, %v990
        %v1153 = vpop.permute.xlu0 %1152
        %1156 = vset.pattern.permute.xlu0 0
        %1157 = vperm.xlu0 %1156, %v991
        %v1158 = vpop.permute.xlu0 %1157
        %1161 = vset.pattern.permute.xlu0 0
        %1162 = vperm.xlu0 %1161, %v992
        %v1163 = vpop.permute.xlu0 %1162
        %1166 = vset.pattern.permute.xlu0 0
        %1167 = vperm.xlu0 %1166, %v993
        %v1168 = vpop.permute.xlu0 %1167
        %1171 = vset.pattern.permute.xlu0 0
        %1172 = vperm.xlu0 %1171, %v994
        %v1173 = vpop.permute.xlu0 %1172
        %1176 = vset.pattern.permute.xlu0 0
        %1177 = vperm.xlu0 %1176, %v995
        %v1178 = vpop.permute.xlu0 %1177
        %1181 = vset.pattern.permute.xlu0 0
        %1182 = vperm.xlu0 %1181, %v996
        %v1183 = vpop.permute.xlu0 %1182
        %1186 = vset.pattern.permute.xlu0 0
        %1187 = vperm.xlu0 %1186, %v997
        %v1188 = vpop.permute.xlu0 %1187
        %1191 = vset.pattern.permute.xlu0 0
        %1192 = vperm.xlu0 %1191, %v998
        %v1193 = vpop.permute.xlu0 %1192
        %1196 = vset.pattern.permute.xlu0 0
        %1197 = vperm.xlu0 %1196, %v999
        %v1198 = vpop.permute.xlu0 %1197
        %1201 = vset.pattern.permute.xlu0 0
        %1202 = vperm.xlu0 %1201, %v1000
        %v1203 = vpop.permute.xlu0 %1202
        %1206 = vset.pattern.permute.xlu0 0
        %1207 = vperm.xlu0 %1206, %v1001
        %v1208 = vpop.permute.xlu0 %1207
        %1211 = vset.pattern.permute.xlu0 0
        %1212 = vperm.xlu0 %1211, %v1002
        %v1213 = vpop.permute.xlu0 %1212
        %1216 = vset.pattern.permute.xlu0 0
        %1217 = vperm.xlu0 %1216, %v1003
        %v1218 = vpop.permute.xlu0 %1217
        %1221 = vset.pattern.permute.xlu0 0
        %1222 = vperm.xlu0 %1221, %v1004
        %v1223 = vpop.permute.xlu0 %1222
        %1226 = vset.pattern.permute.xlu0 0
        %1227 = vperm.xlu0 %1226, %v1005
        %v1228 = vpop.permute.xlu0 %1227
        %v1230 = vsub.f32 %v846, %v1073
        %v1231 = vsub.f32 %v847, %v1078
        %v1232 = vsub.f32 %v848, %v1083
        %v1233 = vsub.f32 %v849, %v1088
        %v1234 = vsub.f32 %v850, %v1093
        %v1235 = vsub.f32 %v851, %v1098
        %v1236 = vsub.f32 %v852, %v1103
        %v1237 = vsub.f32 %v853, %v1108
        %v1238 = vsub.f32 %v854, %v1113
        %v1239 = vsub.f32 %v855, %v1118
        %v1240 = vsub.f32 %v856, %v1123
        %v1241 = vsub.f32 %v857, %v1128
        %v1242 = vsub.f32 %v858, %v1133
        %v1243 = vsub.f32 %v859, %v1138
        %v1244 = vsub.f32 %v860, %v1143
        %v1245 = vsub.f32 %v861, %v1148
        %v1246 = vsub.f32 %v862, %v1153
        %v1247 = vsub.f32 %v863, %v1158
        %v1248 = vsub.f32 %v864, %v1163
        %v1249 = vsub.f32 %v865, %v1168
        %v1250 = vsub.f32 %v866, %v1173
        %v1251 = vsub.f32 %v867, %v1178
        %v1252 = vsub.f32 %v868, %v1183
        %v1253 = vsub.f32 %v869, %v1188
        %v1254 = vsub.f32 %v870, %v1193
        %v1255 = vsub.f32 %v871, %v1198
        %v1256 = vsub.f32 %v872, %v1203
        %v1257 = vsub.f32 %v873, %v1208
        %v1258 = vsub.f32 %v874, %v1213
        %v1259 = vsub.f32 %v875, %v1218
        %v1260 = vsub.f32 %v876, %v1223
        %v1261 = vsub.f32 %v877, %v1228
        %v1262 = vpow.pop %v1230
        %v1263 = vpow.pop %v1231
        %v1264 = vpow.pop %v1232
        %v1265 = vpow.pop %v1233
        %v1266 = vpow.pop %v1234
        %v1267 = vpow.pop %v1235
        %v1268 = vpow.pop %v1236
        %v1269 = vpow.pop %v1237
        %v1270 = vpow.pop %v1238
        %v1271 = vpow.pop %v1239
        %v1272 = vpow.pop %v1240
        %v1273 = vpow.pop %v1241
        %v1274 = vpow.pop %v1242
        %v1275 = vpow.pop %v1243
        %v1276 = vpow.pop %v1244
        %v1277 = vpow.pop %v1245
        %v1278 = vpow.pop %v1246
        %v1279 = vpow.pop %v1247
        %v1280 = vpow.pop %v1248
        %v1281 = vpow.pop %v1249
        %v1282 = vpow.pop %v1250
        %v1283 = vpow.pop %v1251
        %v1284 = vpow.pop %v1252
        %v1285 = vpow.pop %v1253
        %v1286 = vpow.pop %v1254
        %v1287 = vpow.pop %v1255
        %v1288 = vpow.pop %v1256
        %v1289 = vpow.pop %v1257
        %v1290 = vpow.pop %v1258
        %v1291 = vpow.pop %v1259
        %v1292 = vpow.pop %v1260
        %v1293 = vpow.pop %v1261
        %v1294 = vld [vmem:[#allocation3] sm:$0xff]
        %v1295 = vld [vmem:[#allocation3 + $0x8] sm:$0xff]
        %v1296 = vld [vmem:[#allocation3 + $0x10] sm:$0xff]
        %v1297 = vld [vmem:[#allocation3 + $0x18] sm:$0xff]
        %v1298 = vld [vmem:[#allocation3 + $0x20] sm:$0xff]
        %v1299 = vld [vmem:[#allocation3 + $0x28] sm:$0xff]
        %v1300 = vld [vmem:[#allocation3 + $0x30] sm:$0xff]
        %v1301 = vld [vmem:[#allocation3 + $0x38] sm:$0xff]
        %v1302 = vld [vmem:[#allocation3 + $0x40] sm:$0xff]
        %v1303 = vld [vmem:[#allocation3 + $0x48] sm:$0xff]
        %v1304 = vld [vmem:[#allocation3 + $0x50] sm:$0xff]
        %v1305 = vld [vmem:[#allocation3 + $0x58] sm:$0xff]
        %v1306 = vld [vmem:[#allocation3 + $0x60] sm:$0xff]
        %v1307 = vld [vmem:[#allocation3 + $0x68] sm:$0xff]
        %v1308 = vld [vmem:[#allocation3 + $0x70] sm:$0xff]
        %v1309 = vld [vmem:[#allocation3 + $0x78] sm:$0xff]
        %v1310 = vld [vmem:[#allocation3 + $0x80] sm:$0xff]
        %v1311 = vld [vmem:[#allocation3 + $0x88] sm:$0xff]
        %v1312 = vld [vmem:[#allocation3 + $0x90] sm:$0xff]
        %v1313 = vld [vmem:[#allocation3 + $0x98] sm:$0xff]
        %v1314 = vld [vmem:[#allocation3 + $0xa0] sm:$0xff]
        %v1315 = vld [vmem:[#allocation3 + $0xa8] sm:$0xff]
        %v1316 = vld [vmem:[#allocation3 + $0xb0] sm:$0xff]
        %v1317 = vld [vmem:[#allocation3 + $0xb8] sm:$0xff]
        %v1318 = vld [vmem:[#allocation3 + $0xc0] sm:$0xff]
        %v1319 = vld [vmem:[#allocation3 + $0xc8] sm:$0xff]
        %v1320 = vld [vmem:[#allocation3 + $0xd0] sm:$0xff]
        %v1321 = vld [vmem:[#allocation3 + $0xd8] sm:$0xff]
        %v1322 = vld [vmem:[#allocation3 + $0xe0] sm:$0xff]
        %v1323 = vld [vmem:[#allocation3 + $0xe8] sm:$0xff]
        %v1324 = vld [vmem:[#allocation3 + $0xf0] sm:$0xff]
        %v1325 = vld [vmem:[#allocation3 + $0xf8] sm:$0xff]
        %v1326 = vmul.f32 %v1038, %v1294
        %v1327 = vmul.f32 %v1039, %v1295
        %v1328 = vmul.f32 %v1040, %v1296
        %v1329 = vmul.f32 %v1041, %v1297
        %v1330 = vmul.f32 %v1042, %v1298
        %v1331 = vmul.f32 %v1043, %v1299
        %v1332 = vmul.f32 %v1044, %v1300
        %v1333 = vmul.f32 %v1045, %v1301
        %v1334 = vmul.f32 %v1046, %v1302
        %v1335 = vmul.f32 %v1047, %v1303
        %v1336 = vmul.f32 %v1048, %v1304
        %v1337 = vmul.f32 %v1049, %v1305
        %v1338 = vmul.f32 %v1050, %v1306
        %v1339 = vmul.f32 %v1051, %v1307
        %v1340 = vmul.f32 %v1052, %v1308
        %v1341 = vmul.f32 %v1053, %v1309
        %v1342 = vmul.f32 %v1054, %v1310
        %v1343 = vmul.f32 %v1055, %v1311
        %v1344 = vmul.f32 %v1056, %v1312
        %v1345 = vmul.f32 %v1057, %v1313
        %v1346 = vmul.f32 %v1058, %v1314
        %v1347 = vmul.f32 %v1059, %v1315
        %v1348 = vmul.f32 %v1060, %v1316
        %v1349 = vmul.f32 %v1061, %v1317
        %v1350 = vmul.f32 %v1062, %v1318
        %v1351 = vmul.f32 %v1063, %v1319
        %v1352 = vmul.f32 %v1064, %v1320
        %v1353 = vmul.f32 %v1065, %v1321
        %v1354 = vmul.f32 %v1066, %v1322
        %v1355 = vmul.f32 %v1067, %v1323
        %v1356 = vmul.f32 %v1068, %v1324
        %v1357 = vmul.f32 %v1069, %v1325
        %1358 = vadd.xlane.f32.xlu0 %v1262
        %v1359 = vpop.xlane.xlu0 %1358
        %1360 = vadd.xlane.f32.xlu0 %v1263
        %v1361 = vpop.xlane.xlu0 %1360
        %1362 = vadd.xlane.f32.xlu0 %v1264
        %v1363 = vpop.xlane.xlu0 %1362
        %1364 = vadd.xlane.f32.xlu0 %v1265
        %v1365 = vpop.xlane.xlu0 %1364
        %1366 = vadd.xlane.f32.xlu0 %v1266
        %v1367 = vpop.xlane.xlu0 %1366
        %1368 = vadd.xlane.f32.xlu0 %v1267
        %v1369 = vpop.xlane.xlu0 %1368
        %1370 = vadd.xlane.f32.xlu0 %v1268
        %v1371 = vpop.xlane.xlu0 %1370
        %1372 = vadd.xlane.f32.xlu0 %v1269
        %v1373 = vpop.xlane.xlu0 %1372
        %1374 = vadd.xlane.f32.xlu0 %v1270
        %v1375 = vpop.xlane.xlu0 %1374
        %1376 = vadd.xlane.f32.xlu0 %v1271
        %v1377 = vpop.xlane.xlu0 %1376
        %1378 = vadd.xlane.f32.xlu0 %v1272
        %v1379 = vpop.xlane.xlu0 %1378
        %1380 = vadd.xlane.f32.xlu0 %v1273
        %v1381 = vpop.xlane.xlu0 %1380
        %1382 = vadd.xlane.f32.xlu0 %v1274
        %v1383 = vpop.xlane.xlu0 %1382
        %1384 = vadd.xlane.f32.xlu0 %v1275
        %v1385 = vpop.xlane.xlu0 %1384
        %1386 = vadd.xlane.f32.xlu0 %v1276
        %v1387 = vpop.xlane.xlu0 %1386
        %1388 = vadd.xlane.f32.xlu0 %v1277
        %v1389 = vpop.xlane.xlu0 %1388
        %1390 = vadd.xlane.f32.xlu0 %v1278
        %v1391 = vpop.xlane.xlu0 %1390
        %1392 = vadd.xlane.f32.xlu0 %v1279
        %v1393 = vpop.xlane.xlu0 %1392
        %1394 = vadd.xlane.f32.xlu0 %v1280
        %v1395 = vpop.xlane.xlu0 %1394
        %1396 = vadd.xlane.f32.xlu0 %v1281
        %v1397 = vpop.xlane.xlu0 %1396
        %1398 = vadd.xlane.f32.xlu0 %v1282
        %v1399 = vpop.xlane.xlu0 %1398
        %1400 = vadd.xlane.f32.xlu0 %v1283
        %v1401 = vpop.xlane.xlu0 %1400
        %1402 = vadd.xlane.f32.xlu0 %v1284
        %v1403 = vpop.xlane.xlu0 %1402
        %1404 = vadd.xlane.f32.xlu0 %v1285
        %v1405 = vpop.xlane.xlu0 %1404
        %1406 = vadd.xlane.f32.xlu0 %v1286
        %v1407 = vpop.xlane.xlu0 %1406
        %1408 = vadd.xlane.f32.xlu0 %v1287
        %v1409 = vpop.xlane.xlu0 %1408
        %1410 = vadd.xlane.f32.xlu0 %v1288
        %v1411 = vpop.xlane.xlu0 %1410
        %1412 = vadd.xlane.f32.xlu0 %v1289
        %v1413 = vpop.xlane.xlu0 %1412
        %1414 = vadd.xlane.f32.xlu0 %v1290
        %v1415 = vpop.xlane.xlu0 %1414
        %1416 = vadd.xlane.f32.xlu0 %v1291
        %v1417 = vpop.xlane.xlu0 %1416
        %1418 = vadd.xlane.f32.xlu0 %v1292
        %v1419 = vpop.xlane.xlu0 %1418
        %1420 = vadd.xlane.f32.xlu0 %v1293
        %v1421 = vpop.xlane.xlu0 %1420
        %v1422 = vadd.f32 %v1326, %v1359
        %v1423 = vadd.f32 %v1327, %v1361
        %v1424 = vadd.f32 %v1328, %v1363
        %v1425 = vadd.f32 %v1329, %v1365
        %v1426 = vadd.f32 %v1330, %v1367
        %v1427 = vadd.f32 %v1331, %v1369
        %v1428 = vadd.f32 %v1332, %v1371
        %v1429 = vadd.f32 %v1333, %v1373
        %v1430 = vadd.f32 %v1334, %v1375
        %v1431 = vadd.f32 %v1335, %v1377
        %v1432 = vadd.f32 %v1336, %v1379
        %v1433 = vadd.f32 %v1337, %v1381
        %v1434 = vadd.f32 %v1338, %v1383
        %v1435 = vadd.f32 %v1339, %v1385
        %v1436 = vadd.f32 %v1340, %v1387
        %v1437 = vadd.f32 %v1341, %v1389
        %v1438 = vadd.f32 %v1342, %v1391
        %v1439 = vadd.f32 %v1343, %v1393
        %v1440 = vadd.f32 %v1344, %v1395
        %v1441 = vadd.f32 %v1345, %v1397
        %v1442 = vadd.f32 %v1346, %v1399
        %v1443 = vadd.f32 %v1347, %v1401
        %v1444 = vadd.f32 %v1348, %v1403
        %v1445 = vadd.f32 %v1349, %v1405
        %v1446 = vadd.f32 %v1350, %v1407
        %v1447 = vadd.f32 %v1351, %v1409
        %v1448 = vadd.f32 %v1352, %v1411
        %v1449 = vadd.f32 %v1353, %v1413
        %v1450 = vadd.f32 %v1354, %v1415
        %v1451 = vadd.f32 %v1355, %v1417
        %v1452 = vadd.f32 %v1356, %v1419
        %v1453 = vadd.f32 %v1357, %v1421
        %vm1454 = vcmask 7168
        %1455 = vst.msk [vmem:[#allocation3] sm:$0xff] %vm1454, %v1422
        %1456 = vst.msk [vmem:[#allocation3 + $0x8] sm:$0xff] %vm1454, %v1423
        %1457 = vst.msk [vmem:[#allocation3 + $0x10] sm:$0xff] %vm1454, %v1424
        %1458 = vst.msk [vmem:[#allocation3 + $0x18] sm:$0xff] %vm1454, %v1425
        %1459 = vst.msk [vmem:[#allocation3 + $0x20] sm:$0xff] %vm1454, %v1426
        %1460 = vst.msk [vmem:[#allocation3 + $0x28] sm:$0xff] %vm1454, %v1427
        %1461 = vst.msk [vmem:[#allocation3 + $0x30] sm:$0xff] %vm1454, %v1428
        %1462 = vst.msk [vmem:[#allocation3 + $0x38] sm:$0xff] %vm1454, %v1429
        %1463 = vst.msk [vmem:[#allocation3 + $0x40] sm:$0xff] %vm1454, %v1430
        %1464 = vst.msk [vmem:[#allocation3 + $0x48] sm:$0xff] %vm1454, %v1431
        %1465 = vst.msk [vmem:[#allocation3 + $0x50] sm:$0xff] %vm1454, %v1432
        %1466 = vst.msk [vmem:[#allocation3 + $0x58] sm:$0xff] %vm1454, %v1433
        %1467 = vst.msk [vmem:[#allocation3 + $0x60] sm:$0xff] %vm1454, %v1434
        %1468 = vst.msk [vmem:[#allocation3 + $0x68] sm:$0xff] %vm1454, %v1435
        %1469 = vst.msk [vmem:[#allocation3 + $0x70] sm:$0xff] %vm1454, %v1436
        %1470 = vst.msk [vmem:[#allocation3 + $0x78] sm:$0xff] %vm1454, %v1437
        %1471 = vst.msk [vmem:[#allocation3 + $0x80] sm:$0xff] %vm1454, %v1438
        %1472 = vst.msk [vmem:[#allocation3 + $0x88] sm:$0xff] %vm1454, %v1439
        %1473 = vst.msk [vmem:[#allocation3 + $0x90] sm:$0xff] %vm1454, %v1440
        %1474 = vst.msk [vmem:[#allocation3 + $0x98] sm:$0xff] %vm1454, %v1441
        %1475 = vst.msk [vmem:[#allocation3 + $0xa0] sm:$0xff] %vm1454, %v1442
        %1476 = vst.msk [vmem:[#allocation3 + $0xa8] sm:$0xff] %vm1454, %v1443
        %1477 = vst.msk [vmem:[#allocation3 + $0xb0] sm:$0xff] %vm1454, %v1444
        %1478 = vst.msk [vmem:[#allocation3 + $0xb8] sm:$0xff] %vm1454, %v1445
        %1479 = vst.msk [vmem:[#allocation3 + $0xc0] sm:$0xff] %vm1454, %v1446
        %1480 = vst.msk [vmem:[#allocation3 + $0xc8] sm:$0xff] %vm1454, %v1447
        %1481 = vst.msk [vmem:[#allocation3 + $0xd0] sm:$0xff] %vm1454, %v1448
        %1482 = vst.msk [vmem:[#allocation3 + $0xd8] sm:$0xff] %vm1454, %v1449
        %1483 = vst.msk [vmem:[#allocation3 + $0xe0] sm:$0xff] %vm1454, %v1450
        %1484 = vst.msk [vmem:[#allocation3 + $0xe8] sm:$0xff] %vm1454, %v1451
        %1485 = vst.msk [vmem:[#allocation3 + $0xf0] sm:$0xff] %vm1454, %v1452
        %1486 = vst.msk [vmem:[#allocation3 + $0xf8] sm:$0xff] %vm1454, %v1453
        %v1487 = vld [vmem:[#allocation4] sm:$0xff]
        %v1488 = vld [vmem:[#allocation4 + $0x8] sm:$0xff]
        %v1489 = vld [vmem:[#allocation4 + $0x10] sm:$0xff]
        %v1490 = vld [vmem:[#allocation4 + $0x18] sm:$0xff]
        %v1491 = vld [vmem:[#allocation4 + $0x20] sm:$0xff]
        %v1492 = vld [vmem:[#allocation4 + $0x28] sm:$0xff]
        %v1493 = vld [vmem:[#allocation4 + $0x30] sm:$0xff]
        %v1494 = vld [vmem:[#allocation4 + $0x38] sm:$0xff]
        %v1495 = vld [vmem:[#allocation4 + $0x40] sm:$0xff]
        %v1496 = vld [vmem:[#allocation4 + $0x48] sm:$0xff]
        %v1497 = vld [vmem:[#allocation4 + $0x50] sm:$0xff]
        %v1498 = vld [vmem:[#allocation4 + $0x58] sm:$0xff]
        %v1499 = vld [vmem:[#allocation4 + $0x60] sm:$0xff]
        %v1500 = vld [vmem:[#allocation4 + $0x68] sm:$0xff]
        %v1501 = vld [vmem:[#allocation4 + $0x70] sm:$0xff]
        %v1502 = vld [vmem:[#allocation4 + $0x78] sm:$0xff]
        %v1503 = vld [vmem:[#allocation4 + $0x80] sm:$0xff]
        %v1504 = vld [vmem:[#allocation4 + $0x88] sm:$0xff]
        %v1505 = vld [vmem:[#allocation4 + $0x90] sm:$0xff]
        %v1506 = vld [vmem:[#allocation4 + $0x98] sm:$0xff]
        %v1507 = vld [vmem:[#allocation4 + $0xa0] sm:$0xff]
        %v1508 = vld [vmem:[#allocation4 + $0xa8] sm:$0xff]
        %v1509 = vld [vmem:[#allocation4 + $0xb0] sm:$0xff]
        %v1510 = vld [vmem:[#allocation4 + $0xb8] sm:$0xff]
        %v1511 = vld [vmem:[#allocation4 + $0xc0] sm:$0xff]
        %v1512 = vld [vmem:[#allocation4 + $0xc8] sm:$0xff]
        %v1513 = vld [vmem:[#allocation4 + $0xd0] sm:$0xff]
        %v1514 = vld [vmem:[#allocation4 + $0xd8] sm:$0xff]
        %v1515 = vld [vmem:[#allocation4 + $0xe0] sm:$0xff]
        %v1516 = vld [vmem:[#allocation4 + $0xe8] sm:$0xff]
        %v1517 = vld [vmem:[#allocation4 + $0xf0] sm:$0xff]
        %v1518 = vld [vmem:[#allocation4 + $0xf8] sm:$0xff]
        %1520 = vset.pattern.permute.xlu0 0
        %1521 = vperm.xlu0 %1520, %v1038
        %v1522 = vpop.permute.xlu0 %1521
        %1525 = vset.pattern.permute.xlu0 0
        %1526 = vperm.xlu0 %1525, %v1039
        %v1527 = vpop.permute.xlu0 %1526
        %1530 = vset.pattern.permute.xlu0 0
        %1531 = vperm.xlu0 %1530, %v1040
        %v1532 = vpop.permute.xlu0 %1531
        %1535 = vset.pattern.permute.xlu0 0
        %1536 = vperm.xlu0 %1535, %v1041
        %v1537 = vpop.permute.xlu0 %1536
        %1540 = vset.pattern.permute.xlu0 0
        %1541 = vperm.xlu0 %1540, %v1042
        %v1542 = vpop.permute.xlu0 %1541
        %1545 = vset.pattern.permute.xlu0 0
        %1546 = vperm.xlu0 %1545, %v1043
        %v1547 = vpop.permute.xlu0 %1546
        %1550 = vset.pattern.permute.xlu0 0
        %1551 = vperm.xlu0 %1550, %v1044
        %v1552 = vpop.permute.xlu0 %1551
        %1555 = vset.pattern.permute.xlu0 0
        %1556 = vperm.xlu0 %1555, %v1045
        %v1557 = vpop.permute.xlu0 %1556
        %1560 = vset.pattern.permute.xlu0 0
        %1561 = vperm.xlu0 %1560, %v1046
        %v1562 = vpop.permute.xlu0 %1561
        %1565 = vset.pattern.permute.xlu0 0
        %1566 = vperm.xlu0 %1565, %v1047
        %v1567 = vpop.permute.xlu0 %1566
        %1570 = vset.pattern.permute.xlu0 0
        %1571 = vperm.xlu0 %1570, %v1048
        %v1572 = vpop.permute.xlu0 %1571
        %1575 = vset.pattern.permute.xlu0 0
        %1576 = vperm.xlu0 %1575, %v1049
        %v1577 = vpop.permute.xlu0 %1576
        %1580 = vset.pattern.permute.xlu0 0
        %1581 = vperm.xlu0 %1580, %v1050
        %v1582 = vpop.permute.xlu0 %1581
        %1585 = vset.pattern.permute.xlu0 0
        %1586 = vperm.xlu0 %1585, %v1051
        %v1587 = vpop.permute.xlu0 %1586
        %1590 = vset.pattern.permute.xlu0 0
        %1591 = vperm.xlu0 %1590, %v1052
        %v1592 = vpop.permute.xlu0 %1591
        %1595 = vset.pattern.permute.xlu0 0
        %1596 = vperm.xlu0 %1595, %v1053
        %v1597 = vpop.permute.xlu0 %1596
        %1600 = vset.pattern.permute.xlu0 0
        %1601 = vperm.xlu0 %1600, %v1054
        %v1602 = vpop.permute.xlu0 %1601
        %1605 = vset.pattern.permute.xlu0 0
        %1606 = vperm.xlu0 %1605, %v1055
        %v1607 = vpop.permute.xlu0 %1606
        %1610 = vset.pattern.permute.xlu0 0
        %1611 = vperm.xlu0 %1610, %v1056
        %v1612 = vpop.permute.xlu0 %1611
        %1615 = vset.pattern.permute.xlu0 0
        %1616 = vperm.xlu0 %1615, %v1057
        %v1617 = vpop.permute.xlu0 %1616
        %1620 = vset.pattern.permute.xlu0 0
        %1621 = vperm.xlu0 %1620, %v1058
        %v1622 = vpop.permute.xlu0 %1621
        %1625 = vset.pattern.permute.xlu0 0
        %1626 = vperm.xlu0 %1625, %v1059
        %v1627 = vpop.permute.xlu0 %1626
        %1630 = vset.pattern.permute.xlu0 0
        %1631 = vperm.xlu0 %1630, %v1060
        %v1632 = vpop.permute.xlu0 %1631
        %1635 = vset.pattern.permute.xlu0 0
        %1636 = vperm.xlu0 %1635, %v1061
        %v1637 = vpop.permute.xlu0 %1636
        %1640 = vset.pattern.permute.xlu0 0
        %1641 = vperm.xlu0 %1640, %v1062
        %v1642 = vpop.permute.xlu0 %1641
        %1645 = vset.pattern.permute.xlu0 0
        %1646 = vperm.xlu0 %1645, %v1063
        %v1647 = vpop.permute.xlu0 %1646
        %1650 = vset.pattern.permute.xlu0 0
        %1651 = vperm.xlu0 %1650, %v1064
        %v1652 = vpop.permute.xlu0 %1651
        %1655 = vset.pattern.permute.xlu0 0
        %1656 = vperm.xlu0 %1655, %v1065
        %v1657 = vpop.permute.xlu0 %1656
        %1660 = vset.pattern.permute.xlu0 0
        %1661 = vperm.xlu0 %1660, %v1066
        %v1662 = vpop.permute.xlu0 %1661
        %1665 = vset.pattern.permute.xlu0 0
        %1666 = vperm.xlu0 %1665, %v1067
        %v1667 = vpop.permute.xlu0 %1666
        %1670 = vset.pattern.permute.xlu0 0
        %1671 = vperm.xlu0 %1670, %v1068
        %v1672 = vpop.permute.xlu0 %1671
        %1675 = vset.pattern.permute.xlu0 0
        %1676 = vperm.xlu0 %1675, %v1069
        %v1677 = vpop.permute.xlu0 %1676
        %v1679 = vmul.f32 %v1522, %v1487
        %v1680 = vmul.f32 %v1527, %v1488
        %v1681 = vmul.f32 %v1532, %v1489
        %v1682 = vmul.f32 %v1537, %v1490
        %v1683 = vmul.f32 %v1542, %v1491
        %v1684 = vmul.f32 %v1547, %v1492
        %v1685 = vmul.f32 %v1552, %v1493
        %v1686 = vmul.f32 %v1557, %v1494
        %v1687 = vmul.f32 %v1562, %v1495
        %v1688 = vmul.f32 %v1567, %v1496
        %v1689 = vmul.f32 %v1572, %v1497
        %v1690 = vmul.f32 %v1577, %v1498
        %v1691 = vmul.f32 %v1582, %v1499
        %v1692 = vmul.f32 %v1587, %v1500
        %v1693 = vmul.f32 %v1592, %v1501
        %v1694 = vmul.f32 %v1597, %v1502
        %v1695 = vmul.f32 %v1602, %v1503
        %v1696 = vmul.f32 %v1607, %v1504
        %v1697 = vmul.f32 %v1612, %v1505
        %v1698 = vmul.f32 %v1617, %v1506
        %v1699 = vmul.f32 %v1622, %v1507
        %v1700 = vmul.f32 %v1627, %v1508
        %v1701 = vmul.f32 %v1632, %v1509
        %v1702 = vmul.f32 %v1637, %v1510
        %v1703 = vmul.f32 %v1642, %v1511
        %v1704 = vmul.f32 %v1647, %v1512
        %v1705 = vmul.f32 %v1652, %v1513
        %v1706 = vmul.f32 %v1657, %v1514
        %v1707 = vmul.f32 %v1662, %v1515
        %v1708 = vmul.f32 %v1667, %v1516
        %v1709 = vmul.f32 %v1672, %v1517
        %v1710 = vmul.f32 %v1677, %v1518
        %v1711 = vpack.c.bf16 %v1262, %v1262
        %v1712 = vpack.c.bf16 %v1263, %v1263
        %v1713 = vpack.c.bf16 %v1264, %v1264
        %v1714 = vpack.c.bf16 %v1265, %v1265
        %v1715 = vpack.c.bf16 %v1266, %v1266
        %v1716 = vpack.c.bf16 %v1267, %v1267
        %v1717 = vpack.c.bf16 %v1268, %v1268
        %v1718 = vpack.c.bf16 %v1269, %v1269
        %v1719 = vpack.c.bf16 %v1270, %v1270
        %v1720 = vpack.c.bf16 %v1271, %v1271
        %v1721 = vpack.c.bf16 %v1272, %v1272
        %v1722 = vpack.c.bf16 %v1273, %v1273
        %v1723 = vpack.c.bf16 %v1274, %v1274
        %v1724 = vpack.c.bf16 %v1275, %v1275
        %v1725 = vpack.c.bf16 %v1276, %v1276
        %v1726 = vpack.c.bf16 %v1277, %v1277
        %v1727 = vpack.c.bf16 %v1278, %v1278
        %v1728 = vpack.c.bf16 %v1279, %v1279
        %v1729 = vpack.c.bf16 %v1280, %v1280
        %v1730 = vpack.c.bf16 %v1281, %v1281
        %v1731 = vpack.c.bf16 %v1282, %v1282
        %v1732 = vpack.c.bf16 %v1283, %v1283
        %v1733 = vpack.c.bf16 %v1284, %v1284
        %v1734 = vpack.c.bf16 %v1285, %v1285
        %v1735 = vpack.c.bf16 %v1286, %v1286
        %v1736 = vpack.c.bf16 %v1287, %v1287
        %v1737 = vpack.c.bf16 %v1288, %v1288
        %v1738 = vpack.c.bf16 %v1289, %v1289
        %v1739 = vpack.c.bf16 %v1290, %v1290
        %v1740 = vpack.c.bf16 %v1291, %v1291
        %v1741 = vpack.c.bf16 %v1292, %v1292
        %v1742 = vpack.c.bf16 %v1293, %v1293
        %v1743 = vld [vmem:[%s349] sm:$0xf]
        %v1744 = vld [vmem:[%s349 + $0x4] sm:$0xf]
        %v1745 = vld [vmem:[%s349 + $0x8] sm:$0xf]
        %v1746 = vld [vmem:[%s349 + $0xc] sm:$0xf]
        %v1747 = vld [vmem:[%s349 + $0x10] sm:$0xf]
        %v1748 = vld [vmem:[%s349 + $0x14] sm:$0xf]
        %v1749 = vld [vmem:[%s349 + $0x18] sm:$0xf]
        %v1750 = vld [vmem:[%s349 + $0x1c] sm:$0xf]
        %v1751 = vld [vmem:[%s349 + $0x20] sm:$0xf]
        %v1752 = vld [vmem:[%s349 + $0x24] sm:$0xf]
        %v1753 = vld [vmem:[%s349 + $0x28] sm:$0xf]
        %v1754 = vld [vmem:[%s349 + $0x2c] sm:$0xf]
        %v1755 = vld [vmem:[%s349 + $0x30] sm:$0xf]
        %v1756 = vld [vmem:[%s349 + $0x34] sm:$0xf]
        %v1757 = vld [vmem:[%s349 + $0x38] sm:$0xf]
        %v1758 = vld [vmem:[%s349 + $0x3c] sm:$0xf]
        %v1759 = vld [vmem:[%s349 + $0x40] sm:$0xf]
        %v1760 = vld [vmem:[%s349 + $0x44] sm:$0xf]
        %v1761 = vld [vmem:[%s349 + $0x48] sm:$0xf]
        %v1762 = vld [vmem:[%s349 + $0x4c] sm:$0xf]
        %v1763 = vld [vmem:[%s349 + $0x50] sm:$0xf]
        %v1764 = vld [vmem:[%s349 + $0x54] sm:$0xf]
        %v1765 = vld [vmem:[%s349 + $0x58] sm:$0xf]
        %v1766 = vld [vmem:[%s349 + $0x5c] sm:$0xf]
        %v1767 = vld [vmem:[%s349 + $0x60] sm:$0xf]
        %v1768 = vld [vmem:[%s349 + $0x64] sm:$0xf]
        %v1769 = vld [vmem:[%s349 + $0x68] sm:$0xf]
        %v1770 = vld [vmem:[%s349 + $0x6c] sm:$0xf]
        %v1771 = vld [vmem:[%s349 + $0x70] sm:$0xf]
        %v1772 = vld [vmem:[%s349 + $0x74] sm:$0xf]
        %v1773 = vld [vmem:[%s349 + $0x78] sm:$0xf]
        %v1774 = vld [vmem:[%s349 + $0x7c] sm:$0xf]
        %v1791 = vunpack.c.l.b16 %v1711
        %v1792 = vunpack.c.l.b16 %v1712
        %v1793 = vunpack.c.l.b16 %v1713
        %v1794 = vunpack.c.l.b16 %v1714
        %v1795 = vunpack.c.l.b16 %v1715
        %v1796 = vunpack.c.l.b16 %v1716
        %v1797 = vunpack.c.l.b16 %v1717
        %v1798 = vunpack.c.l.b16 %v1718
        %v1799 = vunpack.c.l.b16 %v1719
        %v1800 = vunpack.c.l.b16 %v1720
        %v1801 = vunpack.c.l.b16 %v1721
        %v1802 = vunpack.c.l.b16 %v1722
        %v1803 = vunpack.c.l.b16 %v1723
        %v1804 = vunpack.c.l.b16 %v1724
        %v1805 = vunpack.c.l.b16 %v1725
        %v1806 = vunpack.c.l.b16 %v1726
        %v1807 = vpack.c.b16 %v1792, %v1791
        %v1808 = vpack.c.b16 %v1794, %v1793
        %v1809 = vpack.c.b16 %v1796, %v1795
        %v1810 = vpack.c.b16 %v1798, %v1797
        %v1811 = vpack.c.b16 %v1800, %v1799
        %v1812 = vpack.c.b16 %v1802, %v1801
        %v1813 = vpack.c.b16 %v1804, %v1803
        %v1814 = vpack.c.b16 %v1806, %v1805
        %v1839 = vunpack.c.l.b16 %v1743
        %v1840 = vunpack.c.l.b16 %v1744
        %v1841 = vunpack.c.l.b16 %v1745
        %v1842 = vunpack.c.l.b16 %v1746
        %v1843 = vunpack.c.l.b16 %v1747
        %v1844 = vunpack.c.l.b16 %v1748
        %v1845 = vunpack.c.l.b16 %v1749
        %v1846 = vunpack.c.l.b16 %v1750
        %v1847 = vunpack.c.l.b16 %v1751
        %v1848 = vunpack.c.l.b16 %v1752
        %v1849 = vunpack.c.l.b16 %v1753
        %v1850 = vunpack.c.l.b16 %v1754
        %v1851 = vunpack.c.l.b16 %v1755
        %v1852 = vunpack.c.l.b16 %v1756
        %v1853 = vunpack.c.l.b16 %v1757
        %v1854 = vunpack.c.l.b16 %v1758
        %v1855 = vpack.c.b16 %v1840, %v1839
        %v1856 = vpack.c.b16 %v1842, %v1841
        %v1857 = vpack.c.b16 %v1844, %v1843
        %v1858 = vpack.c.b16 %v1846, %v1845
        %v1859 = vpack.c.b16 %v1848, %v1847
        %v1860 = vpack.c.b16 %v1850, %v1849
        %v1861 = vpack.c.b16 %v1852, %v1851
        %v1862 = vpack.c.b16 %v1854, %v1853
        %1871 = vmatpush.bf16.msra.mxu0 %v1862
        %1872 = vmatpush.bf16.msra.mxu0 %v1861
        %1873 = vmatpush.bf16.msra.mxu0 %v1860
        %1874 = vmatpush.bf16.msra.mxu0 %v1859
        %1875 = vmatpush.bf16.msra.mxu0 %v1858
        %1876 = vmatpush.bf16.msra.mxu0 %v1857
        %1877 = vmatpush.bf16.msra.mxu0 %v1856
        %1878 = vmatpush.bf16.msra.mxu0 %v1855
        %1879 = vmatmul.bf16.gmra.mxu0 %v1807
        %v1880 = vpop.f32.mrf.mxu0
        %v1881 = vadd.f32 0.0, %v1880
        %v1882 = vpop.f32.mrf.mxu0
        %v1883 = vadd.f32 0.0, %v1882
        %1884 = vmatmul.bf16.gmra.mxu0 %v1808
        %v1885 = vpop.f32.mrf.mxu0
        %v1886 = vadd.f32 0.0, %v1885
        %v1887 = vpop.f32.mrf.mxu0
        %v1888 = vadd.f32 0.0, %v1887
        %1889 = vmatmul.bf16.gmra.mxu0 %v1809
        %v1890 = vpop.f32.mrf.mxu0
        %v1891 = vadd.f32 0.0, %v1890
        %v1892 = vpop.f32.mrf.mxu0
        %v1893 = vadd.f32 0.0, %v1892
        %1894 = vmatmul.bf16.gmra.mxu0 %v1810
        %v1895 = vpop.f32.mrf.mxu0
        %v1896 = vadd.f32 0.0, %v1895
        %v1897 = vpop.f32.mrf.mxu0
        %v1898 = vadd.f32 0.0, %v1897
        %1899 = vmatmul.bf16.gmra.mxu0 %v1811
        %v1900 = vpop.f32.mrf.mxu0
        %v1901 = vadd.f32 0.0, %v1900
        %v1902 = vpop.f32.mrf.mxu0
        %v1903 = vadd.f32 0.0, %v1902
        %1904 = vmatmul.bf16.gmra.mxu0 %v1812
        %v1905 = vpop.f32.mrf.mxu0
        %v1906 = vadd.f32 0.0, %v1905
        %v1907 = vpop.f32.mrf.mxu0
        %v1908 = vadd.f32 0.0, %v1907
        %1909 = vmatmul.bf16.gmra.mxu0 %v1813
        %v1910 = vpop.f32.mrf.mxu0
        %v1911 = vadd.f32 0.0, %v1910
        %v1912 = vpop.f32.mrf.mxu0
        %v1913 = vadd.f32 0.0, %v1912
        %1914 = vmatmul.bf16.gmra.mxu0 %v1814
        %v1915 = vpop.f32.mrf.mxu0
        %v1916 = vadd.f32 0.0, %v1915
        %v1917 = vpop.f32.mrf.mxu0
        %v1918 = vadd.f32 0.0, %v1917
        %1919 = vdwg.mxu0
        %v1936 = vunpack.c.l.b16 %v1727
        %v1937 = vunpack.c.l.b16 %v1728
        %v1938 = vunpack.c.l.b16 %v1729
        %v1939 = vunpack.c.l.b16 %v1730
        %v1940 = vunpack.c.l.b16 %v1731
        %v1941 = vunpack.c.l.b16 %v1732
        %v1942 = vunpack.c.l.b16 %v1733
        %v1943 = vunpack.c.l.b16 %v1734
        %v1944 = vunpack.c.l.b16 %v1735
        %v1945 = vunpack.c.l.b16 %v1736
        %v1946 = vunpack.c.l.b16 %v1737
        %v1947 = vunpack.c.l.b16 %v1738
        %v1948 = vunpack.c.l.b16 %v1739
        %v1949 = vunpack.c.l.b16 %v1740
        %v1950 = vunpack.c.l.b16 %v1741
        %v1951 = vunpack.c.l.b16 %v1742
        %v1952 = vpack.c.b16 %v1937, %v1936
        %v1953 = vpack.c.b16 %v1939, %v1938
        %v1954 = vpack.c.b16 %v1941, %v1940
        %v1955 = vpack.c.b16 %v1943, %v1942
        %v1956 = vpack.c.b16 %v1945, %v1944
        %v1957 = vpack.c.b16 %v1947, %v1946
        %v1958 = vpack.c.b16 %v1949, %v1948
        %v1959 = vpack.c.b16 %v1951, %v1950
        %v1984 = vunpack.c.l.b16 %v1759
        %v1985 = vunpack.c.l.b16 %v1760
        %v1986 = vunpack.c.l.b16 %v1761
        %v1987 = vunpack.c.l.b16 %v1762
        %v1988 = vunpack.c.l.b16 %v1763
        %v1989 = vunpack.c.l.b16 %v1764
        %v1990 = vunpack.c.l.b16 %v1765
        %v1991 = vunpack.c.l.b16 %v1766
        %v1992 = vunpack.c.l.b16 %v1767
        %v1993 = vunpack.c.l.b16 %v1768
        %v1994 = vunpack.c.l.b16 %v1769
        %v1995 = vunpack.c.l.b16 %v1770
        %v1996 = vunpack.c.l.b16 %v1771
        %v1997 = vunpack.c.l.b16 %v1772
        %v1998 = vunpack.c.l.b16 %v1773
        %v1999 = vunpack.c.l.b16 %v1774
        %v2000 = vpack.c.b16 %v1985, %v1984
        %v2001 = vpack.c.b16 %v1987, %v1986
        %v2002 = vpack.c.b16 %v1989, %v1988
        %v2003 = vpack.c.b16 %v1991, %v1990
        %v2004 = vpack.c.b16 %v1993, %v1992
        %v2005 = vpack.c.b16 %v1995, %v1994
        %v2006 = vpack.c.b16 %v1997, %v1996
        %v2007 = vpack.c.b16 %v1999, %v1998
        %2016 = vmatpush.bf16.msra.mxu0 %v2007
        %2017 = vmatpush.bf16.msra.mxu0 %v2006
        %2018 = vmatpush.bf16.msra.mxu0 %v2005
        %2019 = vmatpush.bf16.msra.mxu0 %v2004
        %2020 = vmatpush.bf16.msra.mxu0 %v2003
        %2021 = vmatpush.bf16.msra.mxu0 %v2002
        %2022 = vmatpush.bf16.msra.mxu0 %v2001
        %2023 = vmatpush.bf16.msra.mxu0 %v2000
        %2024 = vmatmul.bf16.gmra.mxu0 %v1952
        %v2025 = vpop.f32.mrf.mxu0
        %v2026 = vadd.f32 0.0, %v2025
        %v2027 = vpop.f32.mrf.mxu0
        %v2028 = vadd.f32 0.0, %v2027
        %2029 = vmatmul.bf16.gmra.mxu0 %v1953
        %v2030 = vpop.f32.mrf.mxu0
        %v2031 = vadd.f32 0.0, %v2030
        %v2032 = vpop.f32.mrf.mxu0
        %v2033 = vadd.f32 0.0, %v2032
        %2034 = vmatmul.bf16.gmra.mxu0 %v1954
        %v2035 = vpop.f32.mrf.mxu0
        %v2036 = vadd.f32 0.0, %v2035
        %v2037 = vpop.f32.mrf.mxu0
        %v2038 = vadd.f32 0.0, %v2037
        %2039 = vmatmul.bf16.gmra.mxu0 %v1955
        %v2040 = vpop.f32.mrf.mxu0
        %v2041 = vadd.f32 0.0, %v2040
        %v2042 = vpop.f32.mrf.mxu0
        %v2043 = vadd.f32 0.0, %v2042
        %2044 = vmatmul.bf16.gmra.mxu0 %v1956
        %v2045 = vpop.f32.mrf.mxu0
        %v2046 = vadd.f32 0.0, %v2045
        %v2047 = vpop.f32.mrf.mxu0
        %v2048 = vadd.f32 0.0, %v2047
        %2049 = vmatmul.bf16.gmra.mxu0 %v1957
        %v2050 = vpop.f32.mrf.mxu0
        %v2051 = vadd.f32 0.0, %v2050
        %v2052 = vpop.f32.mrf.mxu0
        %v2053 = vadd.f32 0.0, %v2052
        %2054 = vmatmul.bf16.gmra.mxu0 %v1958
        %v2055 = vpop.f32.mrf.mxu0
        %v2056 = vadd.f32 0.0, %v2055
        %v2057 = vpop.f32.mrf.mxu0
        %v2058 = vadd.f32 0.0, %v2057
        %2059 = vmatmul.bf16.gmra.mxu0 %v1959
        %v2060 = vpop.f32.mrf.mxu0
        %v2061 = vadd.f32 0.0, %v2060
        %v2062 = vpop.f32.mrf.mxu0
        %v2063 = vadd.f32 0.0, %v2062
        %2064 = vdwg.mxu0
        %v2065 = vadd.f32 %v1679, %v1881
        %v2066 = vadd.f32 %v1680, %v1883
        %v2067 = vadd.f32 %v1681, %v1886
        %v2068 = vadd.f32 %v1682, %v1888
        %v2069 = vadd.f32 %v1683, %v1891
        %v2070 = vadd.f32 %v1684, %v1893
        %v2071 = vadd.f32 %v1685, %v1896
        %v2072 = vadd.f32 %v1686, %v1898
        %v2073 = vadd.f32 %v1687, %v1901
        %v2074 = vadd.f32 %v1688, %v1903
        %v2075 = vadd.f32 %v1689, %v1906
        %v2076 = vadd.f32 %v1690, %v1908
        %v2077 = vadd.f32 %v1691, %v1911
        %v2078 = vadd.f32 %v1692, %v1913
        %v2079 = vadd.f32 %v1693, %v1916
        %v2080 = vadd.f32 %v1694, %v1918
        %v2081 = vadd.f32 %v1695, %v2026
        %v2082 = vadd.f32 %v1696, %v2028
        %v2083 = vadd.f32 %v1697, %v2031
        %v2084 = vadd.f32 %v1698, %v2033
        %v2085 = vadd.f32 %v1699, %v2036
        %v2086 = vadd.f32 %v1700, %v2038
        %v2087 = vadd.f32 %v1701, %v2041
        %v2088 = vadd.f32 %v1702, %v2043
        %v2089 = vadd.f32 %v1703, %v2046
        %v2090 = vadd.f32 %v1704, %v2048
        %v2091 = vadd.f32 %v1705, %v2051
        %v2092 = vadd.f32 %v1706, %v2053
        %v2093 = vadd.f32 %v1707, %v2056
        %v2094 = vadd.f32 %v1708, %v2058
        %v2095 = vadd.f32 %v1709, %v2061
        %v2096 = vadd.f32 %v1710, %v2063
        %2097 = vst [vmem:[#allocation4] sm:$0xff] %v2065
        %2098 = vst [vmem:[#allocation4 + $0x8] sm:$0xff] %v2066
        %2099 = vst [vmem:[#allocation4 + $0x10] sm:$0xff] %v2067
        %2100 = vst [vmem:[#allocation4 + $0x18] sm:$0xff] %v2068
        %2101 = vst [vmem:[#allocation4 + $0x20] sm:$0xff] %v2069
        %2102 = vst [vmem:[#allocation4 + $0x28] sm:$0xff] %v2070
        %2103 = vst [vmem:[#allocation4 + $0x30] sm:$0xff] %v2071
        %2104 = vst [vmem:[#allocation4 + $0x38] sm:$0xff] %v2072
        %2105 = vst [vmem:[#allocation4 + $0x40] sm:$0xff] %v2073
        %2106 = vst [vmem:[#allocation4 + $0x48] sm:$0xff] %v2074
        %2107 = vst [vmem:[#allocation4 + $0x50] sm:$0xff] %v2075
        %2108 = vst [vmem:[#allocation4 + $0x58] sm:$0xff] %v2076
        %2109 = vst [vmem:[#allocation4 + $0x60] sm:$0xff] %v2077
        %2110 = vst [vmem:[#allocation4 + $0x68] sm:$0xff] %v2078
        %2111 = vst [vmem:[#allocation4 + $0x70] sm:$0xff] %v2079
        %2112 = vst [vmem:[#allocation4 + $0x78] sm:$0xff] %v2080
        %2113 = vst [vmem:[#allocation4 + $0x80] sm:$0xff] %v2081
        %2114 = vst [vmem:[#allocation4 + $0x88] sm:$0xff] %v2082
        %2115 = vst [vmem:[#allocation4 + $0x90] sm:$0xff] %v2083
        %2116 = vst [vmem:[#allocation4 + $0x98] sm:$0xff] %v2084
        %2117 = vst [vmem:[#allocation4 + $0xa0] sm:$0xff] %v2085
        %2118 = vst [vmem:[#allocation4 + $0xa8] sm:$0xff] %v2086
        %2119 = vst [vmem:[#allocation4 + $0xb0] sm:$0xff] %v2087
        %2120 = vst [vmem:[#allocation4 + $0xb8] sm:$0xff] %v2088
        %2121 = vst [vmem:[#allocation4 + $0xc0] sm:$0xff] %v2089
        %2122 = vst [vmem:[#allocation4 + $0xc8] sm:$0xff] %v2090
        %2123 = vst [vmem:[#allocation4 + $0xd0] sm:$0xff] %v2091
        %2124 = vst [vmem:[#allocation4 + $0xd8] sm:$0xff] %v2092
        %2125 = vst [vmem:[#allocation4 + $0xe0] sm:$0xff] %v2093
        %2126 = vst [vmem:[#allocation4 + $0xe8] sm:$0xff] %v2094
        %2127 = vst [vmem:[#allocation4 + $0xf0] sm:$0xff] %v2095
        %2128 = vst [vmem:[#allocation4 + $0xf8] sm:$0xff] %v2096
        %2129 = vst.msk [vmem:[#allocation2] sm:$0xff] %vm1454, %v974
        %2130 = vst.msk [vmem:[#allocation2 + $0x8] sm:$0xff] %vm1454, %v975
        %2131 = vst.msk [vmem:[#allocation2 + $0x10] sm:$0xff] %vm1454, %v976
        %2132 = vst.msk [vmem:[#allocation2 + $0x18] sm:$0xff] %vm1454, %v977
        %2133 = vst.msk [vmem:[#allocation2 + $0x20] sm:$0xff] %vm1454, %v978
        %2134 = vst.msk [vmem:[#allocation2 + $0x28] sm:$0xff] %vm1454, %v979
        %2135 = vst.msk [vmem:[#allocation2 + $0x30] sm:$0xff] %vm1454, %v980
        %2136 = vst.msk [vmem:[#allocation2 + $0x38] sm:$0xff] %vm1454, %v981
        %2137 = vst.msk [vmem:[#allocation2 + $0x40] sm:$0xff] %vm1454, %v982
        %2138 = vst.msk [vmem:[#allocation2 + $0x48] sm:$0xff] %vm1454, %v983
        %2139 = vst.msk [vmem:[#allocation2 + $0x50] sm:$0xff] %vm1454, %v984
        %2140 = vst.msk [vmem:[#allocation2 + $0x58] sm:$0xff] %vm1454, %v985
        %2141 = vst.msk [vmem:[#allocation2 + $0x60] sm:$0xff] %vm1454, %v986
        %2142 = vst.msk [vmem:[#allocation2 + $0x68] sm:$0xff] %vm1454, %v987
        %2143 = vst.msk [vmem:[#allocation2 + $0x70] sm:$0xff] %vm1454, %v988
        %2144 = vst.msk [vmem:[#allocation2 + $0x78] sm:$0xff] %vm1454, %v989
        %2145 = vst.msk [vmem:[#allocation2 + $0x80] sm:$0xff] %vm1454, %v990
        %2146 = vst.msk [vmem:[#allocation2 + $0x88] sm:$0xff] %vm1454, %v991
        %2147 = vst.msk [vmem:[#allocation2 + $0x90] sm:$0xff] %vm1454, %v992
        %2148 = vst.msk [vmem:[#allocation2 + $0x98] sm:$0xff] %vm1454, %v993
        %2149 = vst.msk [vmem:[#allocation2 + $0xa0] sm:$0xff] %vm1454, %v994
        %2150 = vst.msk [vmem:[#allocation2 + $0xa8] sm:$0xff] %vm1454, %v995
        %2151 = vst.msk [vmem:[#allocation2 + $0xb0] sm:$0xff] %vm1454, %v996
        %2152 = vst.msk [vmem:[#allocation2 + $0xb8] sm:$0xff] %vm1454, %v997
        %2153 = vst.msk [vmem:[#allocation2 + $0xc0] sm:$0xff] %vm1454, %v998
        %2154 = vst.msk [vmem:[#allocation2 + $0xc8] sm:$0xff] %vm1454, %v999
        %2155 = vst.msk [vmem:[#allocation2 + $0xd0] sm:$0xff] %vm1454, %v1000
        %2156 = vst.msk [vmem:[#allocation2 + $0xd8] sm:$0xff] %vm1454, %v1001
        %2157 = vst.msk [vmem:[#allocation2 + $0xe0] sm:$0xff] %vm1454, %v1002
        %2158 = vst.msk [vmem:[#allocation2 + $0xe8] sm:$0xff] %vm1454, %v1003
        %2159 = vst.msk [vmem:[#allocation2 + $0xf0] sm:$0xff] %vm1454, %v1004
        %2160 = vst.msk [vmem:[#allocation2 + $0xf8] sm:$0xff] %vm1454, %v1005
        %p2161 = scmp.eq.s32.totalorder %s30, 1
        // Predicated region
        $region49: #{tpu_custom_call.1} parent=31 // pred_check
          %p2162 = pneg %p2161
        $region50: #{tpu_custom_call.1} parent=31 // pred_check_branch
          %2164 = sbr.rel (%p2162) target = $region52
        $region51: #{tpu_custom_call.1} parent=31 // pred_region
          %v2165 = vld [vmem:[#allocation4] sm:$0xff]
          %v2166 = vld [vmem:[#allocation4 + $0x8] sm:$0xff]
          %v2167 = vld [vmem:[#allocation4 + $0x10] sm:$0xff]
          %v2168 = vld [vmem:[#allocation4 + $0x18] sm:$0xff]
          %v2169 = vld [vmem:[#allocation4 + $0x20] sm:$0xff]
          %v2170 = vld [vmem:[#allocation4 + $0x28] sm:$0xff]
          %v2171 = vld [vmem:[#allocation4 + $0x30] sm:$0xff]
          %v2172 = vld [vmem:[#allocation4 + $0x38] sm:$0xff]
          %v2173 = vld [vmem:[#allocation4 + $0x40] sm:$0xff]
          %v2174 = vld [vmem:[#allocation4 + $0x48] sm:$0xff]
          %v2175 = vld [vmem:[#allocation4 + $0x50] sm:$0xff]
          %v2176 = vld [vmem:[#allocation4 + $0x58] sm:$0xff]
          %v2177 = vld [vmem:[#allocation4 + $0x60] sm:$0xff]
          %v2178 = vld [vmem:[#allocation4 + $0x68] sm:$0xff]
          %v2179 = vld [vmem:[#allocation4 + $0x70] sm:$0xff]
          %v2180 = vld [vmem:[#allocation4 + $0x78] sm:$0xff]
          %v2181 = vld [vmem:[#allocation4 + $0x80] sm:$0xff]
          %v2182 = vld [vmem:[#allocation4 + $0x88] sm:$0xff]
          %v2183 = vld [vmem:[#allocation4 + $0x90] sm:$0xff]
          %v2184 = vld [vmem:[#allocation4 + $0x98] sm:$0xff]
          %v2185 = vld [vmem:[#allocation4 + $0xa0] sm:$0xff]
          %v2186 = vld [vmem:[#allocation4 + $0xa8] sm:$0xff]
          %v2187 = vld [vmem:[#allocation4 + $0xb0] sm:$0xff]
          %v2188 = vld [vmem:[#allocation4 + $0xb8] sm:$0xff]
          %v2189 = vld [vmem:[#allocation4 + $0xc0] sm:$0xff]
          %v2190 = vld [vmem:[#allocation4 + $0xc8] sm:$0xff]
          %v2191 = vld [vmem:[#allocation4 + $0xd0] sm:$0xff]
          %v2192 = vld [vmem:[#allocation4 + $0xd8] sm:$0xff]
          %v2193 = vld [vmem:[#allocation4 + $0xe0] sm:$0xff]
          %v2194 = vld [vmem:[#allocation4 + $0xe8] sm:$0xff]
          %v2195 = vld [vmem:[#allocation4 + $0xf0] sm:$0xff]
          %v2196 = vld [vmem:[#allocation4 + $0xf8] sm:$0xff]
          %v2197 = vld [vmem:[#allocation3] sm:$0xff]
          %v2198 = vld [vmem:[#allocation3 + $0x8] sm:$0xff]
          %v2199 = vld [vmem:[#allocation3 + $0x10] sm:$0xff]
          %v2200 = vld [vmem:[#allocation3 + $0x18] sm:$0xff]
          %v2201 = vld [vmem:[#allocation3 + $0x20] sm:$0xff]
          %v2202 = vld [vmem:[#allocation3 + $0x28] sm:$0xff]
          %v2203 = vld [vmem:[#allocation3 + $0x30] sm:$0xff]
          %v2204 = vld [vmem:[#allocation3 + $0x38] sm:$0xff]
          %v2205 = vld [vmem:[#allocation3 + $0x40] sm:$0xff]
          %v2206 = vld [vmem:[#allocation3 + $0x48] sm:$0xff]
          %v2207 = vld [vmem:[#allocation3 + $0x50] sm:$0xff]
          %v2208 = vld [vmem:[#allocation3 + $0x58] sm:$0xff]
          %v2209 = vld [vmem:[#allocation3 + $0x60] sm:$0xff]
          %v2210 = vld [vmem:[#allocation3 + $0x68] sm:$0xff]
          %v2211 = vld [vmem:[#allocation3 + $0x70] sm:$0xff]
          %v2212 = vld [vmem:[#allocation3 + $0x78] sm:$0xff]
          %v2213 = vld [vmem:[#allocation3 + $0x80] sm:$0xff]
          %v2214 = vld [vmem:[#allocation3 + $0x88] sm:$0xff]
          %v2215 = vld [vmem:[#allocation3 + $0x90] sm:$0xff]
          %v2216 = vld [vmem:[#allocation3 + $0x98] sm:$0xff]
          %v2217 = vld [vmem:[#allocation3 + $0xa0] sm:$0xff]
          %v2218 = vld [vmem:[#allocation3 + $0xa8] sm:$0xff]
          %v2219 = vld [vmem:[#allocation3 + $0xb0] sm:$0xff]
          %v2220 = vld [vmem:[#allocation3 + $0xb8] sm:$0xff]
          %v2221 = vld [vmem:[#allocation3 + $0xc0] sm:$0xff]
          %v2222 = vld [vmem:[#allocation3 + $0xc8] sm:$0xff]
          %v2223 = vld [vmem:[#allocation3 + $0xd0] sm:$0xff]
          %v2224 = vld [vmem:[#allocation3 + $0xd8] sm:$0xff]
          %v2225 = vld [vmem:[#allocation3 + $0xe0] sm:$0xff]
          %v2226 = vld [vmem:[#allocation3 + $0xe8] sm:$0xff]
          %v2227 = vld [vmem:[#allocation3 + $0xf0] sm:$0xff]
          %v2228 = vld [vmem:[#allocation3 + $0xf8] sm:$0xff]
          %2230 = vset.pattern.permute.xlu0 0
          %2231 = vperm.xlu0 %2230, %v2197
          %v2232 = vpop.permute.xlu0 %2231
          %2235 = vset.pattern.permute.xlu0 0
          %2236 = vperm.xlu0 %2235, %v2198
          %v2237 = vpop.permute.xlu0 %2236
          %2240 = vset.pattern.permute.xlu0 0
          %2241 = vperm.xlu0 %2240, %v2199
          %v2242 = vpop.permute.xlu0 %2241
          %2245 = vset.pattern.permute.xlu0 0
          %2246 = vperm.xlu0 %2245, %v2200
          %v2247 = vpop.permute.xlu0 %2246
          %2250 = vset.pattern.permute.xlu0 0
          %2251 = vperm.xlu0 %2250, %v2201
          %v2252 = vpop.permute.xlu0 %2251
          %2255 = vset.pattern.permute.xlu0 0
          %2256 = vperm.xlu0 %2255, %v2202
          %v2257 = vpop.permute.xlu0 %2256
          %2260 = vset.pattern.permute.xlu0 0
          %2261 = vperm.xlu0 %2260, %v2203
          %v2262 = vpop.permute.xlu0 %2261
          %2265 = vset.pattern.permute.xlu0 0
          %2266 = vperm.xlu0 %2265, %v2204
          %v2267 = vpop.permute.xlu0 %2266
          %2270 = vset.pattern.permute.xlu0 0
          %2271 = vperm.xlu0 %2270, %v2205
          %v2272 = vpop.permute.xlu0 %2271
          %2275 = vset.pattern.permute.xlu0 0
          %2276 = vperm.xlu0 %2275, %v2206
          %v2277 = vpop.permute.xlu0 %2276
          %2280 = vset.pattern.permute.xlu0 0
          %2281 = vperm.xlu0 %2280, %v2207
          %v2282 = vpop.permute.xlu0 %2281
          %2285 = vset.pattern.permute.xlu0 0
          %2286 = vperm.xlu0 %2285, %v2208
          %v2287 = vpop.permute.xlu0 %2286
          %2290 = vset.pattern.permute.xlu0 0
          %2291 = vperm.xlu0 %2290, %v2209
          %v2292 = vpop.permute.xlu0 %2291
          %2295 = vset.pattern.permute.xlu0 0
          %2296 = vperm.xlu0 %2295, %v2210
          %v2297 = vpop.permute.xlu0 %2296
          %2300 = vset.pattern.permute.xlu0 0
          %2301 = vperm.xlu0 %2300, %v2211
          %v2302 = vpop.permute.xlu0 %2301
          %2305 = vset.pattern.permute.xlu0 0
          %2306 = vperm.xlu0 %2305, %v2212
          %v2307 = vpop.permute.xlu0 %2306
          %2310 = vset.pattern.permute.xlu0 0
          %2311 = vperm.xlu0 %2310, %v2213
          %v2312 = vpop.permute.xlu0 %2311
          %2315 = vset.pattern.permute.xlu0 0
          %2316 = vperm.xlu0 %2315, %v2214
          %v2317 = vpop.permute.xlu0 %2316
          %2320 = vset.pattern.permute.xlu0 0
          %2321 = vperm.xlu0 %2320, %v2215
          %v2322 = vpop.permute.xlu0 %2321
          %2325 = vset.pattern.permute.xlu0 0
          %2326 = vperm.xlu0 %2325, %v2216
          %v2327 = vpop.permute.xlu0 %2326
          %2330 = vset.pattern.permute.xlu0 0
          %2331 = vperm.xlu0 %2330, %v2217
          %v2332 = vpop.permute.xlu0 %2331
          %2335 = vset.pattern.permute.xlu0 0
          %2336 = vperm.xlu0 %2335, %v2218
          %v2337 = vpop.permute.xlu0 %2336
          %2340 = vset.pattern.permute.xlu0 0
          %2341 = vperm.xlu0 %2340, %v2219
          %v2342 = vpop.permute.xlu0 %2341
          %2345 = vset.pattern.permute.xlu0 0
          %2346 = vperm.xlu0 %2345, %v2220
          %v2347 = vpop.permute.xlu0 %2346
          %2350 = vset.pattern.permute.xlu0 0
          %2351 = vperm.xlu0 %2350, %v2221
          %v2352 = vpop.permute.xlu0 %2351
          %2355 = vset.pattern.permute.xlu0 0
          %2356 = vperm.xlu0 %2355, %v2222
          %v2357 = vpop.permute.xlu0 %2356
          %2360 = vset.pattern.permute.xlu0 0
          %2361 = vperm.xlu0 %2360, %v2223
          %v2362 = vpop.permute.xlu0 %2361
          %2365 = vset.pattern.permute.xlu0 0
          %2366 = vperm.xlu0 %2365, %v2224
          %v2367 = vpop.permute.xlu0 %2366
          %2370 = vset.pattern.permute.xlu0 0
          %2371 = vperm.xlu0 %2370, %v2225
          %v2372 = vpop.permute.xlu0 %2371
          %2375 = vset.pattern.permute.xlu0 0
          %2376 = vperm.xlu0 %2375, %v2226
          %v2377 = vpop.permute.xlu0 %2376
          %2380 = vset.pattern.permute.xlu0 0
          %2381 = vperm.xlu0 %2380, %v2227
          %v2382 = vpop.permute.xlu0 %2381
          %2385 = vset.pattern.permute.xlu0 0
          %2386 = vperm.xlu0 %2385, %v2228
          %v2387 = vpop.permute.xlu0 %2386
          %v2389 = vrcp.pop %v2232
          %v2390 = vmul.f32 %v2232, %v2389
          %v2391 = vsub.f32 1.0, %v2390
          %v2392 = vmul.f32 %v2389, %v2391
          %v2393 = vadd.f32 %v2389, %v2392
          %vm2394 = vweird.f32 %v2232
          %vm2395 = vweird.f32 %v2389
          %vm2396 = vmor %vm2394, %vm2395
          %v2397 = vsel %vm2396, %v2389, %v2393
          %v2398 = vand.u32 2147483647, %v2232
          %vm2399 = vcmp.eq.f32.partialorder %v2398, 8.507059e+37
          %v2400 = vand.u32 %v2232, 2147483648
          %v2401 = vor.u32 1.1754944e-38, %v2400
          %v2402 = vsel %vm2399, %v2401, %v2397
          %v2403 = vmul.f32 %v2165, %v2402
          %v2404 = vrcp.pop %v2237
          %v2405 = vmul.f32 %v2237, %v2404
          %v2406 = vsub.f32 1.0, %v2405
          %v2407 = vmul.f32 %v2404, %v2406
          %v2408 = vadd.f32 %v2404, %v2407
          %vm2409 = vweird.f32 %v2237
          %vm2410 = vweird.f32 %v2404
          %vm2411 = vmor %vm2409, %vm2410
          %v2412 = vsel %vm2411, %v2404, %v2408
          %v2413 = vand.u32 2147483647, %v2237
          %vm2414 = vcmp.eq.f32.partialorder %v2413, 8.507059e+37
          %v2415 = vand.u32 %v2237, 2147483648
          %v2416 = vor.u32 1.1754944e-38, %v2415
          %v2417 = vsel %vm2414, %v2416, %v2412
          %v2418 = vmul.f32 %v2166, %v2417
          %v2419 = vrcp.pop %v2242
          %v2420 = vmul.f32 %v2242, %v2419
          %v2421 = vsub.f32 1.0, %v2420
          %v2422 = vmul.f32 %v2419, %v2421
          %v2423 = vadd.f32 %v2419, %v2422
          %vm2424 = vweird.f32 %v2242
          %vm2425 = vweird.f32 %v2419
          %vm2426 = vmor %vm2424, %vm2425
          %v2427 = vsel %vm2426, %v2419, %v2423
          %v2428 = vand.u32 2147483647, %v2242
          %vm2429 = vcmp.eq.f32.partialorder %v2428, 8.507059e+37
          %v2430 = vand.u32 %v2242, 2147483648
          %v2431 = vor.u32 1.1754944e-38, %v2430
          %v2432 = vsel %vm2429, %v2431, %v2427
          %v2433 = vmul.f32 %v2167, %v2432
          %v2434 = vrcp.pop %v2247
          %v2435 = vmul.f32 %v2247, %v2434
          %v2436 = vsub.f32 1.0, %v2435
          %v2437 = vmul.f32 %v2434, %v2436
          %v2438 = vadd.f32 %v2434, %v2437
          %vm2439 = vweird.f32 %v2247
          %vm2440 = vweird.f32 %v2434
          %vm2441 = vmor %vm2439, %vm2440
          %v2442 = vsel %vm2441, %v2434, %v2438
          %v2443 = vand.u32 2147483647, %v2247
          %vm2444 = vcmp.eq.f32.partialorder %v2443, 8.507059e+37
          %v2445 = vand.u32 %v2247, 2147483648
          %v2446 = vor.u32 1.1754944e-38, %v2445
          %v2447 = vsel %vm2444, %v2446, %v2442
          %v2448 = vmul.f32 %v2168, %v2447
          %v2449 = vrcp.pop %v2252
          %v2450 = vmul.f32 %v2252, %v2449
          %v2451 = vsub.f32 1.0, %v2450
          %v2452 = vmul.f32 %v2449, %v2451
          %v2453 = vadd.f32 %v2449, %v2452
          %vm2454 = vweird.f32 %v2252
          %vm2455 = vweird.f32 %v2449
          %vm2456 = vmor %vm2454, %vm2455
          %v2457 = vsel %vm2456, %v2449, %v2453
          %v2458 = vand.u32 2147483647, %v2252
          %vm2459 = vcmp.eq.f32.partialorder %v2458, 8.507059e+37
          %v2460 = vand.u32 %v2252, 2147483648
          %v2461 = vor.u32 1.1754944e-38, %v2460
          %v2462 = vsel %vm2459, %v2461, %v2457
          %v2463 = vmul.f32 %v2169, %v2462
          %v2464 = vrcp.pop %v2257
          %v2465 = vmul.f32 %v2257, %v2464
          %v2466 = vsub.f32 1.0, %v2465
          %v2467 = vmul.f32 %v2464, %v2466
          %v2468 = vadd.f32 %v2464, %v2467
          %vm2469 = vweird.f32 %v2257
          %vm2470 = vweird.f32 %v2464
          %vm2471 = vmor %vm2469, %vm2470
          %v2472 = vsel %vm2471, %v2464, %v2468
          %v2473 = vand.u32 2147483647, %v2257
          %vm2474 = vcmp.eq.f32.partialorder %v2473, 8.507059e+37
          %v2475 = vand.u32 %v2257, 2147483648
          %v2476 = vor.u32 1.1754944e-38, %v2475
          %v2477 = vsel %vm2474, %v2476, %v2472
          %v2478 = vmul.f32 %v2170, %v2477
          %v2479 = vrcp.pop %v2262
          %v2480 = vmul.f32 %v2262, %v2479
          %v2481 = vsub.f32 1.0, %v2480
          %v2482 = vmul.f32 %v2479, %v2481
          %v2483 = vadd.f32 %v2479, %v2482
          %vm2484 = vweird.f32 %v2262
          %vm2485 = vweird.f32 %v2479
          %vm2486 = vmor %vm2484, %vm2485
          %v2487 = vsel %vm2486, %v2479, %v2483
          %v2488 = vand.u32 2147483647, %v2262
          %vm2489 = vcmp.eq.f32.partialorder %v2488, 8.507059e+37
          %v2490 = vand.u32 %v2262, 2147483648
          %v2491 = vor.u32 1.1754944e-38, %v2490
          %v2492 = vsel %vm2489, %v2491, %v2487
          %v2493 = vmul.f32 %v2171, %v2492
          %v2494 = vrcp.pop %v2267
          %v2495 = vmul.f32 %v2267, %v2494
          %v2496 = vsub.f32 1.0, %v2495
          %v2497 = vmul.f32 %v2494, %v2496
          %v2498 = vadd.f32 %v2494, %v2497
          %vm2499 = vweird.f32 %v2267
          %vm2500 = vweird.f32 %v2494
          %vm2501 = vmor %vm2499, %vm2500
          %v2502 = vsel %vm2501, %v2494, %v2498
          %v2503 = vand.u32 2147483647, %v2267
          %vm2504 = vcmp.eq.f32.partialorder %v2503, 8.507059e+37
          %v2505 = vand.u32 %v2267, 2147483648
          %v2506 = vor.u32 1.1754944e-38, %v2505
          %v2507 = vsel %vm2504, %v2506, %v2502
          %v2508 = vmul.f32 %v2172, %v2507
          %v2509 = vrcp.pop %v2272
          %v2510 = vmul.f32 %v2272, %v2509
          %v2511 = vsub.f32 1.0, %v2510
          %v2512 = vmul.f32 %v2509, %v2511
          %v2513 = vadd.f32 %v2509, %v2512
          %vm2514 = vweird.f32 %v2272
          %vm2515 = vweird.f32 %v2509
          %vm2516 = vmor %vm2514, %vm2515
          %v2517 = vsel %vm2516, %v2509, %v2513
          %v2518 = vand.u32 2147483647, %v2272
          %vm2519 = vcmp.eq.f32.partialorder %v2518, 8.507059e+37
          %v2520 = vand.u32 %v2272, 2147483648
          %v2521 = vor.u32 1.1754944e-38, %v2520
          %v2522 = vsel %vm2519, %v2521, %v2517
          %v2523 = vmul.f32 %v2173, %v2522
          %v2524 = vrcp.pop %v2277
          %v2525 = vmul.f32 %v2277, %v2524
          %v2526 = vsub.f32 1.0, %v2525
          %v2527 = vmul.f32 %v2524, %v2526
          %v2528 = vadd.f32 %v2524, %v2527
          %vm2529 = vweird.f32 %v2277
          %vm2530 = vweird.f32 %v2524
          %vm2531 = vmor %vm2529, %vm2530
          %v2532 = vsel %vm2531, %v2524, %v2528
          %v2533 = vand.u32 2147483647, %v2277
          %vm2534 = vcmp.eq.f32.partialorder %v2533, 8.507059e+37
          %v2535 = vand.u32 %v2277, 2147483648
          %v2536 = vor.u32 1.1754944e-38, %v2535
          %v2537 = vsel %vm2534, %v2536, %v2532
          %v2538 = vmul.f32 %v2174, %v2537
          %v2539 = vrcp.pop %v2282
          %v2540 = vmul.f32 %v2282, %v2539
          %v2541 = vsub.f32 1.0, %v2540
          %v2542 = vmul.f32 %v2539, %v2541
          %v2543 = vadd.f32 %v2539, %v2542
          %vm2544 = vweird.f32 %v2282
          %vm2545 = vweird.f32 %v2539
          %vm2546 = vmor %vm2544, %vm2545
          %v2547 = vsel %vm2546, %v2539, %v2543
          %v2548 = vand.u32 2147483647, %v2282
          %vm2549 = vcmp.eq.f32.partialorder %v2548, 8.507059e+37
          %v2550 = vand.u32 %v2282, 2147483648
          %v2551 = vor.u32 1.1754944e-38, %v2550
          %v2552 = vsel %vm2549, %v2551, %v2547
          %v2553 = vmul.f32 %v2175, %v2552
          %v2554 = vrcp.pop %v2287
          %v2555 = vmul.f32 %v2287, %v2554
          %v2556 = vsub.f32 1.0, %v2555
          %v2557 = vmul.f32 %v2554, %v2556
          %v2558 = vadd.f32 %v2554, %v2557
          %vm2559 = vweird.f32 %v2287
          %vm2560 = vweird.f32 %v2554
          %vm2561 = vmor %vm2559, %vm2560
          %v2562 = vsel %vm2561, %v2554, %v2558
          %v2563 = vand.u32 2147483647, %v2287
          %vm2564 = vcmp.eq.f32.partialorder %v2563, 8.507059e+37
          %v2565 = vand.u32 %v2287, 2147483648
          %v2566 = vor.u32 1.1754944e-38, %v2565
          %v2567 = vsel %vm2564, %v2566, %v2562
          %v2568 = vmul.f32 %v2176, %v2567
          %v2569 = vrcp.pop %v2292
          %v2570 = vmul.f32 %v2292, %v2569
          %v2571 = vsub.f32 1.0, %v2570
          %v2572 = vmul.f32 %v2569, %v2571
          %v2573 = vadd.f32 %v2569, %v2572
          %vm2574 = vweird.f32 %v2292
          %vm2575 = vweird.f32 %v2569
          %vm2576 = vmor %vm2574, %vm2575
          %v2577 = vsel %vm2576, %v2569, %v2573
          %v2578 = vand.u32 2147483647, %v2292
          %vm2579 = vcmp.eq.f32.partialorder %v2578, 8.507059e+37
          %v2580 = vand.u32 %v2292, 2147483648
          %v2581 = vor.u32 1.1754944e-38, %v2580
          %v2582 = vsel %vm2579, %v2581, %v2577
          %v2583 = vmul.f32 %v2177, %v2582
          %v2584 = vrcp.pop %v2297
          %v2585 = vmul.f32 %v2297, %v2584
          %v2586 = vsub.f32 1.0, %v2585
          %v2587 = vmul.f32 %v2584, %v2586
          %v2588 = vadd.f32 %v2584, %v2587
          %vm2589 = vweird.f32 %v2297
          %vm2590 = vweird.f32 %v2584
          %vm2591 = vmor %vm2589, %vm2590
          %v2592 = vsel %vm2591, %v2584, %v2588
          %v2593 = vand.u32 2147483647, %v2297
          %vm2594 = vcmp.eq.f32.partialorder %v2593, 8.507059e+37
          %v2595 = vand.u32 %v2297, 2147483648
          %v2596 = vor.u32 1.1754944e-38, %v2595
          %v2597 = vsel %vm2594, %v2596, %v2592
          %v2598 = vmul.f32 %v2178, %v2597
          %v2599 = vrcp.pop %v2302
          %v2600 = vmul.f32 %v2302, %v2599
          %v2601 = vsub.f32 1.0, %v2600
          %v2602 = vmul.f32 %v2599, %v2601
          %v2603 = vadd.f32 %v2599, %v2602
          %vm2604 = vweird.f32 %v2302
          %vm2605 = vweird.f32 %v2599
          %vm2606 = vmor %vm2604, %vm2605
          %v2607 = vsel %vm2606, %v2599, %v2603
          %v2608 = vand.u32 2147483647, %v2302
          %vm2609 = vcmp.eq.f32.partialorder %v2608, 8.507059e+37
          %v2610 = vand.u32 %v2302, 2147483648
          %v2611 = vor.u32 1.1754944e-38, %v2610
          %v2612 = vsel %vm2609, %v2611, %v2607
          %v2613 = vmul.f32 %v2179, %v2612
          %v2614 = vrcp.pop %v2307
          %v2615 = vmul.f32 %v2307, %v2614
          %v2616 = vsub.f32 1.0, %v2615
          %v2617 = vmul.f32 %v2614, %v2616
          %v2618 = vadd.f32 %v2614, %v2617
          %vm2619 = vweird.f32 %v2307
          %vm2620 = vweird.f32 %v2614
          %vm2621 = vmor %vm2619, %vm2620
          %v2622 = vsel %vm2621, %v2614, %v2618
          %v2623 = vand.u32 2147483647, %v2307
          %vm2624 = vcmp.eq.f32.partialorder %v2623, 8.507059e+37
          %v2625 = vand.u32 %v2307, 2147483648
          %v2626 = vor.u32 1.1754944e-38, %v2625
          %v2627 = vsel %vm2624, %v2626, %v2622
          %v2628 = vmul.f32 %v2180, %v2627
          %v2629 = vrcp.pop %v2312
          %v2630 = vmul.f32 %v2312, %v2629
          %v2631 = vsub.f32 1.0, %v2630
          %v2632 = vmul.f32 %v2629, %v2631
          %v2633 = vadd.f32 %v2629, %v2632
          %vm2634 = vweird.f32 %v2312
          %vm2635 = vweird.f32 %v2629
          %vm2636 = vmor %vm2634, %vm2635
          %v2637 = vsel %vm2636, %v2629, %v2633
          %v2638 = vand.u32 2147483647, %v2312
          %vm2639 = vcmp.eq.f32.partialorder %v2638, 8.507059e+37
          %v2640 = vand.u32 %v2312, 2147483648
          %v2641 = vor.u32 1.1754944e-38, %v2640
          %v2642 = vsel %vm2639, %v2641, %v2637
          %v2643 = vmul.f32 %v2181, %v2642
          %v2644 = vrcp.pop %v2317
          %v2645 = vmul.f32 %v2317, %v2644
          %v2646 = vsub.f32 1.0, %v2645
          %v2647 = vmul.f32 %v2644, %v2646
          %v2648 = vadd.f32 %v2644, %v2647
          %vm2649 = vweird.f32 %v2317
          %vm2650 = vweird.f32 %v2644
          %vm2651 = vmor %vm2649, %vm2650
          %v2652 = vsel %vm2651, %v2644, %v2648
          %v2653 = vand.u32 2147483647, %v2317
          %vm2654 = vcmp.eq.f32.partialorder %v2653, 8.507059e+37
          %v2655 = vand.u32 %v2317, 2147483648
          %v2656 = vor.u32 1.1754944e-38, %v2655
          %v2657 = vsel %vm2654, %v2656, %v2652
          %v2658 = vmul.f32 %v2182, %v2657
          %v2659 = vrcp.pop %v2322
          %v2660 = vmul.f32 %v2322, %v2659
          %v2661 = vsub.f32 1.0, %v2660
          %v2662 = vmul.f32 %v2659, %v2661
          %v2663 = vadd.f32 %v2659, %v2662
          %vm2664 = vweird.f32 %v2322
          %vm2665 = vweird.f32 %v2659
          %vm2666 = vmor %vm2664, %vm2665
          %v2667 = vsel %vm2666, %v2659, %v2663
          %v2668 = vand.u32 2147483647, %v2322
          %vm2669 = vcmp.eq.f32.partialorder %v2668, 8.507059e+37
          %v2670 = vand.u32 %v2322, 2147483648
          %v2671 = vor.u32 1.1754944e-38, %v2670
          %v2672 = vsel %vm2669, %v2671, %v2667
          %v2673 = vmul.f32 %v2183, %v2672
          %v2674 = vrcp.pop %v2327
          %v2675 = vmul.f32 %v2327, %v2674
          %v2676 = vsub.f32 1.0, %v2675
          %v2677 = vmul.f32 %v2674, %v2676
          %v2678 = vadd.f32 %v2674, %v2677
          %vm2679 = vweird.f32 %v2327
          %vm2680 = vweird.f32 %v2674
          %vm2681 = vmor %vm2679, %vm2680
          %v2682 = vsel %vm2681, %v2674, %v2678
          %v2683 = vand.u32 2147483647, %v2327
          %vm2684 = vcmp.eq.f32.partialorder %v2683, 8.507059e+37
          %v2685 = vand.u32 %v2327, 2147483648
          %v2686 = vor.u32 1.1754944e-38, %v2685
          %v2687 = vsel %vm2684, %v2686, %v2682
          %v2688 = vmul.f32 %v2184, %v2687
          %v2689 = vrcp.pop %v2332
          %v2690 = vmul.f32 %v2332, %v2689
          %v2691 = vsub.f32 1.0, %v2690
          %v2692 = vmul.f32 %v2689, %v2691
          %v2693 = vadd.f32 %v2689, %v2692
          %vm2694 = vweird.f32 %v2332
          %vm2695 = vweird.f32 %v2689
          %vm2696 = vmor %vm2694, %vm2695
          %v2697 = vsel %vm2696, %v2689, %v2693
          %v2698 = vand.u32 2147483647, %v2332
          %vm2699 = vcmp.eq.f32.partialorder %v2698, 8.507059e+37
          %v2700 = vand.u32 %v2332, 2147483648
          %v2701 = vor.u32 1.1754944e-38, %v2700
          %v2702 = vsel %vm2699, %v2701, %v2697
          %v2703 = vmul.f32 %v2185, %v2702
          %v2704 = vrcp.pop %v2337
          %v2705 = vmul.f32 %v2337, %v2704
          %v2706 = vsub.f32 1.0, %v2705
          %v2707 = vmul.f32 %v2704, %v2706
          %v2708 = vadd.f32 %v2704, %v2707
          %vm2709 = vweird.f32 %v2337
          %vm2710 = vweird.f32 %v2704
          %vm2711 = vmor %vm2709, %vm2710
          %v2712 = vsel %vm2711, %v2704, %v2708
          %v2713 = vand.u32 2147483647, %v2337
          %vm2714 = vcmp.eq.f32.partialorder %v2713, 8.507059e+37
          %v2715 = vand.u32 %v2337, 2147483648
          %v2716 = vor.u32 1.1754944e-38, %v2715
          %v2717 = vsel %vm2714, %v2716, %v2712
          %v2718 = vmul.f32 %v2186, %v2717
          %v2719 = vrcp.pop %v2342
          %v2720 = vmul.f32 %v2342, %v2719
          %v2721 = vsub.f32 1.0, %v2720
          %v2722 = vmul.f32 %v2719, %v2721
          %v2723 = vadd.f32 %v2719, %v2722
          %vm2724 = vweird.f32 %v2342
          %vm2725 = vweird.f32 %v2719
          %vm2726 = vmor %vm2724, %vm2725
          %v2727 = vsel %vm2726, %v2719, %v2723
          %v2728 = vand.u32 2147483647, %v2342
          %vm2729 = vcmp.eq.f32.partialorder %v2728, 8.507059e+37
          %v2730 = vand.u32 %v2342, 2147483648
          %v2731 = vor.u32 1.1754944e-38, %v2730
          %v2732 = vsel %vm2729, %v2731, %v2727
          %v2733 = vmul.f32 %v2187, %v2732
          %v2734 = vrcp.pop %v2347
          %v2735 = vmul.f32 %v2347, %v2734
          %v2736 = vsub.f32 1.0, %v2735
          %v2737 = vmul.f32 %v2734, %v2736
          %v2738 = vadd.f32 %v2734, %v2737
          %vm2739 = vweird.f32 %v2347
          %vm2740 = vweird.f32 %v2734
          %vm2741 = vmor %vm2739, %vm2740
          %v2742 = vsel %vm2741, %v2734, %v2738
          %v2743 = vand.u32 2147483647, %v2347
          %vm2744 = vcmp.eq.f32.partialorder %v2743, 8.507059e+37
          %v2745 = vand.u32 %v2347, 2147483648
          %v2746 = vor.u32 1.1754944e-38, %v2745
          %v2747 = vsel %vm2744, %v2746, %v2742
          %v2748 = vmul.f32 %v2188, %v2747
          %v2749 = vrcp.pop %v2352
          %v2750 = vmul.f32 %v2352, %v2749
          %v2751 = vsub.f32 1.0, %v2750
          %v2752 = vmul.f32 %v2749, %v2751
          %v2753 = vadd.f32 %v2749, %v2752
          %vm2754 = vweird.f32 %v2352
          %vm2755 = vweird.f32 %v2749
          %vm2756 = vmor %vm2754, %vm2755
          %v2757 = vsel %vm2756, %v2749, %v2753
          %v2758 = vand.u32 2147483647, %v2352
          %vm2759 = vcmp.eq.f32.partialorder %v2758, 8.507059e+37
          %v2760 = vand.u32 %v2352, 2147483648
          %v2761 = vor.u32 1.1754944e-38, %v2760
          %v2762 = vsel %vm2759, %v2761, %v2757
          %v2763 = vmul.f32 %v2189, %v2762
          %v2764 = vrcp.pop %v2357
          %v2765 = vmul.f32 %v2357, %v2764
          %v2766 = vsub.f32 1.0, %v2765
          %v2767 = vmul.f32 %v2764, %v2766
          %v2768 = vadd.f32 %v2764, %v2767
          %vm2769 = vweird.f32 %v2357
          %vm2770 = vweird.f32 %v2764
          %vm2771 = vmor %vm2769, %vm2770
          %v2772 = vsel %vm2771, %v2764, %v2768
          %v2773 = vand.u32 2147483647, %v2357
          %vm2774 = vcmp.eq.f32.partialorder %v2773, 8.507059e+37
          %v2775 = vand.u32 %v2357, 2147483648
          %v2776 = vor.u32 1.1754944e-38, %v2775
          %v2777 = vsel %vm2774, %v2776, %v2772
          %v2778 = vmul.f32 %v2190, %v2777
          %v2779 = vrcp.pop %v2362
          %v2780 = vmul.f32 %v2362, %v2779
          %v2781 = vsub.f32 1.0, %v2780
          %v2782 = vmul.f32 %v2779, %v2781
          %v2783 = vadd.f32 %v2779, %v2782
          %vm2784 = vweird.f32 %v2362
          %vm2785 = vweird.f32 %v2779
          %vm2786 = vmor %vm2784, %vm2785
          %v2787 = vsel %vm2786, %v2779, %v2783
          %v2788 = vand.u32 2147483647, %v2362
          %vm2789 = vcmp.eq.f32.partialorder %v2788, 8.507059e+37
          %v2790 = vand.u32 %v2362, 2147483648
          %v2791 = vor.u32 1.1754944e-38, %v2790
          %v2792 = vsel %vm2789, %v2791, %v2787
          %v2793 = vmul.f32 %v2191, %v2792
          %v2794 = vrcp.pop %v2367
          %v2795 = vmul.f32 %v2367, %v2794
          %v2796 = vsub.f32 1.0, %v2795
          %v2797 = vmul.f32 %v2794, %v2796
          %v2798 = vadd.f32 %v2794, %v2797
          %vm2799 = vweird.f32 %v2367
          %vm2800 = vweird.f32 %v2794
          %vm2801 = vmor %vm2799, %vm2800
          %v2802 = vsel %vm2801, %v2794, %v2798
          %v2803 = vand.u32 2147483647, %v2367
          %vm2804 = vcmp.eq.f32.partialorder %v2803, 8.507059e+37
          %v2805 = vand.u32 %v2367, 2147483648
          %v2806 = vor.u32 1.1754944e-38, %v2805
          %v2807 = vsel %vm2804, %v2806, %v2802
          %v2808 = vmul.f32 %v2192, %v2807
          %v2809 = vrcp.pop %v2372
          %v2810 = vmul.f32 %v2372, %v2809
          %v2811 = vsub.f32 1.0, %v2810
          %v2812 = vmul.f32 %v2809, %v2811
          %v2813 = vadd.f32 %v2809, %v2812
          %vm2814 = vweird.f32 %v2372
          %vm2815 = vweird.f32 %v2809
          %vm2816 = vmor %vm2814, %vm2815
          %v2817 = vsel %vm2816, %v2809, %v2813
          %v2818 = vand.u32 2147483647, %v2372
          %vm2819 = vcmp.eq.f32.partialorder %v2818, 8.507059e+37
          %v2820 = vand.u32 %v2372, 2147483648
          %v2821 = vor.u32 1.1754944e-38, %v2820
          %v2822 = vsel %vm2819, %v2821, %v2817
          %v2823 = vmul.f32 %v2193, %v2822
          %v2824 = vrcp.pop %v2377
          %v2825 = vmul.f32 %v2377, %v2824
          %v2826 = vsub.f32 1.0, %v2825
          %v2827 = vmul.f32 %v2824, %v2826
          %v2828 = vadd.f32 %v2824, %v2827
          %vm2829 = vweird.f32 %v2377
          %vm2830 = vweird.f32 %v2824
          %vm2831 = vmor %vm2829, %vm2830
          %v2832 = vsel %vm2831, %v2824, %v2828
          %v2833 = vand.u32 2147483647, %v2377
          %vm2834 = vcmp.eq.f32.partialorder %v2833, 8.507059e+37
          %v2835 = vand.u32 %v2377, 2147483648
          %v2836 = vor.u32 1.1754944e-38, %v2835
          %v2837 = vsel %vm2834, %v2836, %v2832
          %v2838 = vmul.f32 %v2194, %v2837
          %v2839 = vrcp.pop %v2382
          %v2840 = vmul.f32 %v2382, %v2839
          %v2841 = vsub.f32 1.0, %v2840
          %v2842 = vmul.f32 %v2839, %v2841
          %v2843 = vadd.f32 %v2839, %v2842
          %vm2844 = vweird.f32 %v2382
          %vm2845 = vweird.f32 %v2839
          %vm2846 = vmor %vm2844, %vm2845
          %v2847 = vsel %vm2846, %v2839, %v2843
          %v2848 = vand.u32 2147483647, %v2382
          %vm2849 = vcmp.eq.f32.partialorder %v2848, 8.507059e+37
          %v2850 = vand.u32 %v2382, 2147483648
          %v2851 = vor.u32 1.1754944e-38, %v2850
          %v2852 = vsel %vm2849, %v2851, %v2847
          %v2853 = vmul.f32 %v2195, %v2852
          %v2854 = vrcp.pop %v2387
          %v2855 = vmul.f32 %v2387, %v2854
          %v2856 = vsub.f32 1.0, %v2855
          %v2857 = vmul.f32 %v2854, %v2856
          %v2858 = vadd.f32 %v2854, %v2857
          %vm2859 = vweird.f32 %v2387
          %vm2860 = vweird.f32 %v2854
          %vm2861 = vmor %vm2859, %vm2860
          %v2862 = vsel %vm2861, %v2854, %v2858
          %v2863 = vand.u32 2147483647, %v2387
          %vm2864 = vcmp.eq.f32.partialorder %v2863, 8.507059e+37
          %v2865 = vand.u32 %v2387, 2147483648
          %v2866 = vor.u32 1.1754944e-38, %v2865
          %v2867 = vsel %vm2864, %v2866, %v2862
          %v2868 = vmul.f32 %v2196, %v2867
          %2869 = vst [vmem:[%s382] sm:$0xff] %v2403
          %2870 = vst [vmem:[%s382 + $0x8] sm:$0xff] %v2418
          %2871 = vst [vmem:[%s382 + $0x10] sm:$0xff] %v2433
          %2872 = vst [vmem:[%s382 + $0x18] sm:$0xff] %v2448
          %2873 = vst [vmem:[%s382 + $0x20] sm:$0xff] %v2463
          %2874 = vst [vmem:[%s382 + $0x28] sm:$0xff] %v2478
          %2875 = vst [vmem:[%s382 + $0x30] sm:$0xff] %v2493
          %2876 = vst [vmem:[%s382 + $0x38] sm:$0xff] %v2508
          %2877 = vst [vmem:[%s382 + $0x40] sm:$0xff] %v2523
          %2878 = vst [vmem:[%s382 + $0x48] sm:$0xff] %v2538
          %2879 = vst [vmem:[%s382 + $0x50] sm:$0xff] %v2553
          %2880 = vst [vmem:[%s382 + $0x58] sm:$0xff] %v2568
          %2881 = vst [vmem:[%s382 + $0x60] sm:$0xff] %v2583
          %2882 = vst [vmem:[%s382 + $0x68] sm:$0xff] %v2598
          %2883 = vst [vmem:[%s382 + $0x70] sm:$0xff] %v2613
          %2884 = vst [vmem:[%s382 + $0x78] sm:$0xff] %v2628
          %2885 = vst [vmem:[%s382 + $0x80] sm:$0xff] %v2643
          %2886 = vst [vmem:[%s382 + $0x88] sm:$0xff] %v2658
          %2887 = vst [vmem:[%s382 + $0x90] sm:$0xff] %v2673
          %2888 = vst [vmem:[%s382 + $0x98] sm:$0xff] %v2688
          %2889 = vst [vmem:[%s382 + $0xa0] sm:$0xff] %v2703
          %2890 = vst [vmem:[%s382 + $0xa8] sm:$0xff] %v2718
          %2891 = vst [vmem:[%s382 + $0xb0] sm:$0xff] %v2733
          %2892 = vst [vmem:[%s382 + $0xb8] sm:$0xff] %v2748
          %2893 = vst [vmem:[%s382 + $0xc0] sm:$0xff] %v2763
          %2894 = vst [vmem:[%s382 + $0xc8] sm:$0xff] %v2778
          %2895 = vst [vmem:[%s382 + $0xd0] sm:$0xff] %v2793
          %2896 = vst [vmem:[%s382 + $0xd8] sm:$0xff] %v2808
          %2897 = vst [vmem:[%s382 + $0xe0] sm:$0xff] %v2823
          %2898 = vst [vmem:[%s382 + $0xe8] sm:$0xff] %v2838
          %2899 = vst [vmem:[%s382 + $0xf0] sm:$0xff] %v2853
          %2900 = vst [vmem:[%s382 + $0xf8] sm:$0xff] %v2868
        $region52: #{tpu_custom_call.1} parent=31 // pred_fallthru
          _
        %s2901 = sand.u32 %s136, 1
        %s2902 = scalar_lea.sflag [#allocation7], %s2901
        %s2903 = sand.u32 %s136, 1
        %s2904 = smul.addr %s2903, 256
        %s2905 = scalar_lea.vmem [#allocation11], %s2904
        // Predicated region
        $region53: #{tpu_custom_call.1} parent=31 // pred_check
          %p2906 = pneg %p146
        $region54: #{tpu_custom_call.1} parent=31 // pred_check_branch
          %2908 = sbr.rel (%p2906) target = $region56
        $region55: #{tpu_custom_call.1} parent=31 // pred_region
          #allocation19 [shape = 'u32[6]{0}', space=smem, size = 0x18, scoped, tag = 'DMA stride descriptor']
          %s2909 = smul.u32 2, %s28
          %s2910 = smul.u32 16, %s29
          %2912 = vsyncadd %s2902, 0
          %s2913 = smul.addr %s2909, 32
          %s2914 = sadd.s32 %s2910, %s2913
          %s2915 = smul.addr %s2914, 8
          %s2916 = scalar_lea.hbm %s3, %s2915
          %s2918 = sshll.u32 1, 14
          %s2919 = sxor.u32 4294967295, %s2918
          %s2922 = sshll.u32 7, 18
          %s2923 = sxor.u32 4294967295, %s2922
          %s2924 = sand.u32 0, %s2923
          %s2926 = sor.u32 %s2924, 0
          %s2927 = sshll.u32 %s2905, 4
          %s2928 = int_to_ptr.vmem [resolvable:$true] %s2927
          %s2929 = sshll.u32 %s2916, 4
          %s2930 = int_to_ptr.hbm [resolvable:$true] %s2929
          %2936 = sst [smem:[#allocation19]] 2048
          %s2937 = scalar_lea.smem [#allocation19], 1
          %2938 = sst [smem:[%s2937]] 4096
          %s2939 = scalar_lea.smem [#allocation19], 2
          %2940 = sst [smem:[%s2939]] 16
          %s2941 = scalar_lea.smem [#allocation19], 3
          %2942 = sst [smem:[%s2941]] 128
          %s2943 = scalar_lea.smem [#allocation19], 4
          %2944 = sst [smem:[%s2943]] 128
          %s2945 = scalar_lea.smem [#allocation19], 5
          %2946 = sst [smem:[%s2945]] 8
          %2948 = dma.general %s2928, 4096, %s2930, %s2902, [#allocation18], [#allocation19], %s2926, 0
        $region56: #{tpu_custom_call.1} parent=31 // pred_fallthru
          _
      $region32: #{tpu_custom_call.1} parent=5 // pred_fallthru
        _
      %p2949 = scmp.le.s32.totalorder 2, %s18
      // Predicated region
      $region57: #{tpu_custom_call.1} parent=5 // pred_check
        %p2950 = pneg %p2949
      $region58: #{tpu_custom_call.1} parent=5 // pred_check_branch
        %2952 = sbr.rel (%p2950) target = $region60
      $region59: #{tpu_custom_call.1} parent=5 // pred_region
        %s2953 = ssub.s32 %s18, 2
        // Predicated region
        $region61: #{tpu_custom_call.1} parent=59 // pred_check
          %p2954 = pneg %p152
        $region62: #{tpu_custom_call.1} parent=59 // pred_check_branch
          %2956 = sbr.rel (%p2954) target = $region64
        $region63: #{tpu_custom_call.1} parent=59 // pred_region
          %s2957 = sand.u32 %s137, 1
          %s2958 = scalar_lea.sflag [#allocation7], %s2957
          %s2959 = sand.u32 %s137, 1
          %s2960 = smul.addr %s2959, 256
          %s2961 = scalar_lea.vmem [#allocation11], %s2960
          %2963 = dma.done %s2958, 4096
        $region64: #{tpu_custom_call.1} parent=59 // pred_fallthru
          _
      $region60: #{tpu_custom_call.1} parent=5 // pred_fallthru
        _
    $region6: #{tpu_custom_call.1} parent=1 // loop_footer
      %s22 = sadd.s32 1, %s18
    $region7: #{tpu_custom_call.1} parent=1 // loop_footer_branch
      %17 = sbr.rel target = $region3
    $region8: #{tpu_custom_call.1} parent=1 // loop_exit
      _
    %2964 = vsyncpa [#allocation6], 1
    %s2965 = scalar_lea.sflag [#allocation6], 1
    %2966 = vsyncpa %s2965, 1
    %2967 = vsyncpa [#allocation9], 1
    %s2968 = scalar_lea.sflag [#allocation9], 1
    %2969 = vsyncpa %s2968, 1
    %2970 = vsyncpa [#allocation7], 1
    %s2971 = scalar_lea.sflag [#allocation7], 1
    %2972 = vsyncpa %s2971, 1

</llo_original>
